<compile_context>
chip_gen: v7x
topology: tpu7x:2x2x1
jax: 0.10.0
libtpu: 0.0.40
codegen_flags: <defaults>
</compile_context>

<pallas_src>
import functools

import jax
import jax.numpy as jnp
from jax.experimental import pallas as pl
from jax.experimental.pallas import tpu as pltpu


FOLD = 8  # batch rows folded per MXU pass -> lane-dense (B/8, 512) x (512, 128)


def _round_up(v, m):
    return ((v + m - 1) // m) * m


def _lr_kernel(x_ref, w_ref, b_ref, o_ref):
    # x_ref: (TMF, FOLD*K)  w_ref: (FOLD*K, FOLD*N)  b_ref: (1, FOLD*N)
    # o_ref: (TMF, FOLD*N)
    x = jnp.maximum(x_ref[...], jnp.zeros((), x_ref.dtype))          # F.relu
    acc = jnp.dot(x.astype(jnp.float32), w_ref[...],
                  preferred_element_type=jnp.float32,
                  precision=jax.lax.Precision.HIGHEST)               # MXU
    o_ref[...] = (acc + b_ref[...]).astype(o_ref.dtype)              # bias


def prepare_lr_params(weight, bias, fold=FOLD):
    """One-time parameter preprocessing (outside the per-call hot path).

    weight: (out_features, in_features)  -- PyTorch Linear layout (N, K)
    bias:   (out_features,)

    Returns the lane-dense block-diagonal weight (fold*K, fold*N) with W^T
    replicated on the `fold` diagonal blocks, and the bias tiled to
    (1, fold*N).  For K=C*S=64, N=S=16 this is a (512, 128) weight (256 KiB
    f32, trivially VMEM-resident).
    """
    w_t = jnp.asarray(weight, jnp.float32).T                 # (K, N)
    k, n = w_t.shape
    eye = jnp.eye(fold, dtype=jnp.float32)
    # w_bd[a*K + kk, b*N + nn] = eye[a, b] * w_t[kk, nn]  (block diagonal)
    w_bd = jnp.einsum("ab,kn->akbn", eye, w_t).reshape(fold * k, fold * n)
    b_bd = jnp.tile(jnp.asarray(bias, jnp.float32).reshape(1, n), (1, fold))
    return w_bd, b_bd


@functools.partial(
    jax.jit,
    static_argnames=("channel_number", "output_size", "tile_rows", "x_dtype"))
def lr_forward(x, w_bd, b_bd, *, channel_number, output_size,
               tile_rows=16384, x_dtype=jnp.float32):
    """Fused relu + Linear(C*S -> S).

    x:     (..., channel_number, output_size)
    w_bd:  (FOLD*C*S, FOLD*S)  block-diagonal weight from prepare_lr_params
    b_bd:  (1, FOLD*S)         tiled bias
    tile_rows: original batch rows per grid step (default 16384 -> 2048 folded
               rows -> 4 MiB x tile; double-buffered working set ~11 MiB,
               safe on v7x's 64 MiB VMEM and well past the >=1-2 MiB tiles
               needed for 85%+ of HBM roofline on v5e/v6e/v7x).
    x_dtype: jnp.bfloat16 halves x HBM traffic on v6e/v7x (accumulation stays
             f32); re-validate tolerances if used.
    """
    k = channel_number * output_size
    n = output_size

    x2 = x.reshape(-1, k).astype(x_dtype)                  # (B, K) glue reshape
    b = x2.shape[0]

    # Fold FOLD rows per matmul row (free row-major reinterpretation).  Pad at
    # most FOLD-1 rows so the fold is exact -- never a tile-sized pad.
    b8 = _round_up(b, FOLD)
    if b8 != b:
        x2 = jnp.pad(x2, ((0, b8 - b), (0, 0)))
    bf = b8 // FOLD
    kf = FOLD * k                                          # 512 for (4, 16)
    nf = FOLD * n                                          # 128 for (4, 16)
    xf = x2.reshape(bf, kf)                                # free view

    # Batch tile in folded rows.  Keep >= 2 grid steps when there is enough
    # batch so v7x's two TensorCores both get work; the ragged last block is
    # handled by Pallas (masked output stores), so no padding up to the tile.
    tmf_cap = max(8, tile_rows // FOLD)
    if bf <= 16:
        tmf = bf                                           # single full block
    else:
        tmf = min(tmf_cap, _round_up(pl.cdiv(bf, 2), 8))
    grid = (pl.cdiv(bf, tmf),)

    cost = pl.CostEstimate(
        flops=2 * b8 * k * n,
        transcendentals=0,
        bytes_accessed=b8 * k * x2.dtype.itemsize + kf * nf * 4 + b8 * n * 4,
    )

    out_f = pl.pallas_call(
        _lr_kernel,
        out_shape=jax.ShapeDtypeStruct((bf, nf), jnp.float32),
        grid_spec=pltpu.PrefetchScalarGridSpec(
            num_scalar_prefetch=0,
            grid=grid,
            in_specs=[
                pl.BlockSpec((tmf, kf), lambda i: (i, 0)),  # x: streamed, lane-dense
                pl.BlockSpec((kf, nf), lambda i: (0, 0)),   # weight: VMEM-resident
                pl.BlockSpec((1, nf), lambda i: (0, 0)),    # bias: VMEM-resident
            ],
            out_specs=pl.BlockSpec((tmf, nf), lambda i: (i, 0)),
        ),
        compiler_params=pltpu.CompilerParams(
            dimension_semantics=("parallel",),              # megacore on v7x
            vmem_limit_bytes=32 * 1024 * 1024,
        ),
        cost_estimate=cost,
    )(xf, w_bd, b_bd)

    out = out_f.reshape(b8, n)                             # free unfold
    if b8 != b:
        out = out[:b]
    return out


def reference_forward(x, weight, bias, channel_number, output_size):
    x2 = x.reshape(-1, channel_number * output_size)
    x2 = jnp.maximum(x2, 0.0)
    return x2 @ weight.T + bias


if __name__ == "__main__":
    channel_number = 4
    output_size = 16
    batch = 8

    key = jax.random.PRNGKey(0)
    kx, kw, kb = jax.random.split(key, 3)

    # deterministic synthetic parameters (PyTorch Linear shapes)
    in_features = channel_number * output_size
    weight = jax.random.normal(kw, (output_size, in_features), jnp.float32) * 0.05
    bias = jax.random.normal(kb, (output_size,), jnp.float32) * 0.05

    # input: (batch, channel_number, output_size)
    x = jax.random.normal(kx, (batch, channel_number, output_size), jnp.float32)

    # one-time parameter prep (kept out of the per-call path)
    w_bd, b_bd = prepare_lr_params(weight, bias)

    out = lr_forward(
        x, w_bd, b_bd,
        channel_number=channel_number, output_size=output_size,
    )
    out = jax.block_until_ready(out)

    ref = reference_forward(x, weight, bias, channel_number, output_size)
    assert out.shape == (batch, output_size)
    assert jnp.allclose(out, ref, atol=1e-5, rtol=1e-5)

    print("KERNEL_OK")
</pallas_src>

<mosaic_0001>
module attributes {stable_mosaic.version = 11 : i64} {
  func.func @_lr_kernel(%arg0: i32, %arg1: memref<1x512xf32, #tpu.memory_space<vmem>>, %arg2: memref<512x128xf32, #tpu.memory_space<vmem>>, %arg3: memref<1x128xf32, #tpu.memory_space<vmem>>, %arg4: memref<1x128xf32, #tpu.memory_space<vmem>>) attributes {dimension_semantics = [#tpu.dimension_semantics<parallel>], iteration_bounds = array<i64: 1>, scalar_prefetch = 0 : i64, scratch_operands = 0 : i64, tpu.core_type = #tpu.core_type<tc>, window_params = [{transform_indices = @transform_0, window_bounds = array<i64: 1, 512>}, {pipeline_mode = #tpu.pipeline_mode<synchronous>, transform_indices = @transform_1, window_bounds = array<i64: 512, 128>}, {pipeline_mode = #tpu.pipeline_mode<synchronous>, transform_indices = @transform_2, window_bounds = array<i64: 1, 128>}, {transform_indices = @transform_3, window_bounds = array<i64: 1, 128>}]} {
    %c0 = arith.constant 0 : index
    %c0_0 = arith.constant 0 : index
    %0 = vector.load %arg1[%c0, %c0_0] : memref<1x512xf32, #tpu.memory_space<vmem>>, vector<1x512xf32>
    %cst = arith.constant 0.000000e+00 : f32
    %1 = vector.broadcast %cst : f32 to vector<1x512xf32>
    %2 = arith.maximumf %0, %1 : vector<1x512xf32>
    %c0_1 = arith.constant 0 : index
    %c0_2 = arith.constant 0 : index
    %3 = vector.load %arg2[%c0_1, %c0_2] : memref<512x128xf32, #tpu.memory_space<vmem>>, vector<512x128xf32>
    %cst_3 = arith.constant dense<0.000000e+00> : vector<1x128xf32>
    %4 = tpu.matmul %2, %3, %cst_3 {dimension_numbers = #tpu.dot_dimension_numbers<[1], [0], [0], [1], [0, 0, 1, 1], [], []>, precision = #tpu.contract_precision<fp32>} : vector<1x512xf32>, vector<512x128xf32>, vector<1x128xf32> -> vector<1x128xf32>
    %c0_4 = arith.constant 0 : index
    %c0_5 = arith.constant 0 : index
    %5 = vector.load %arg3[%c0_4, %c0_5] : memref<1x128xf32, #tpu.memory_space<vmem>>, vector<1x128xf32>
    %6 = arith.addf %4, %5 : vector<1x128xf32>
    %c0_6 = arith.constant 0 : index
    %c0_7 = arith.constant 0 : index
    %7 = vector.load %arg4[%c0_6, %c0_7] : memref<1x128xf32, #tpu.memory_space<vmem>>, vector<1x128xf32>
    tpu.vector_store %arg4[%c0_6, %c0_7], %6 {strides = array<i32>} : memref<1x128xf32, #tpu.memory_space<vmem>>, vector<1x128xf32>,
    return
  }
  func.func @transform_0(%arg0: i32) -> (i32, i32) {
    %c0_i32 = arith.constant 0 : i32
    %c0_i32_0 = arith.constant 0 : i32
    return %arg0, %c0_i32 : i32, i32
  }
  func.func @transform_1(%arg0: i32) -> (i32, i32) {
    %c0_i32 = arith.constant 0 : i32
    %c0_i32_0 = arith.constant 0 : i32
    %c0_i32_1 = arith.constant 0 : i32
    return %c0_i32, %c0_i32_0 : i32, i32
  }
  func.func @transform_2(%arg0: i32) -> (i32, i32) {
    %c0_i32 = arith.constant 0 : i32
    %c0_i32_0 = arith.constant 0 : i32
    %c0_i32_1 = arith.constant 0 : i32
    return %c0_i32, %c0_i32_0 : i32, i32
  }
  func.func @transform_3(%arg0: i32) -> (i32, i32) {
    %c0_i32 = arith.constant 0 : i32
    %c0_i32_0 = arith.constant 0 : i32
    return %arg0, %c0_i32 : i32, i32
  }
}

</mosaic_0001>

<llo_original>
// kernel: lr_forward.1
$region0: #{lr_forward.1}
  #allocation0 [shape = 'u32[]', space=smem, size = 0x4, offset = 0x4, fixed_abs, tag = 'smem constant byte address 0x4 - core index']
  #allocation1 [shape = 'u32[144,128]{1,0:T(1,128)}', space=vmem, size = 0x12000, scoped, tag = 'internal scratch']
  %s0 = inlined_call_operand.vmem [shape: f32[1,512], index: 0, kind: input, shape index: {}]
  %s1 = inlined_call_operand.hbm [shape: f32[512,128], index: 1, kind: input, shape index: {}]
  %s2 = inlined_call_operand.vmem [shape: f32[1,128], index: 2, kind: input, shape index: {}]
  %s3 = inlined_call_operand.vmem [shape: f32[1,128], index: 3, kind: output, shape index: {}]
  %s4 = sld [smem:[#allocation0]]
  $region26: #{lr_forward.1} parent=0
    _
  %s6 = ssub.s32 1, %s4
  %s7 = scalar_select 0, %s6, %s4
  $region1: #{lr_forward.1} parent=0
    #allocation2 [shape = 'u8[262144]{0}', space=vmem, size = 0x40000, scoped, tag = 'input window, operand 1, single buffered']
    #allocation3 [shape = 's32[1]{0}', space=sflag, size = 0x4, scoped, tag = 'scoped memory for lr_forward.1']
    %8 = vsyncpa [#allocation3], 0
    // Predicated region
    $region2: #{lr_forward.1} parent=1 // pred_check
      _
    $region3: #{lr_forward.1} parent=1 // pred_check_branch
      %10 = sbr.rel (0) target = $region5
    $region4: #{lr_forward.1} parent=1 // pred_region
      _
    $region5: #{lr_forward.1} parent=1 // pred_fallthru
      _
    // Predicated region
    $region6: #{lr_forward.1} parent=1 // pred_check
      _
    $region7: #{lr_forward.1} parent=1 // pred_check_branch
      %12 = sbr.rel (0) target = $region9
    $region8: #{lr_forward.1} parent=1 // pred_region
      %s14 = ssub.s32 8192, 8192
      %15 = vsyncadd [#allocation3], %s14
      %s16 = sshll.u32 [#allocation2], 4
      %s17 = int_to_ptr.vmem [resolvable:$true] %s16
      %22 = dma.hbm_to_vmem [thread:$0]  %s1, 8192, %s17, [#allocation3], 128, 128, 8
    $region9: #{lr_forward.1} parent=1 // pred_fallthru
      _
    // Predicated region
    $region10: #{lr_forward.1} parent=1 // pred_check
      _
    $region11: #{lr_forward.1} parent=1 // pred_check_branch
      %24 = sbr.rel (0) target = $region13
    $region12: #{lr_forward.1} parent=1 // pred_region
      _
    $region13: #{lr_forward.1} parent=1 // pred_fallthru
      _
    // Predicated region
    $region14: #{lr_forward.1} parent=1 // pred_check
      _
    $region15: #{lr_forward.1} parent=1 // pred_check_branch
      %26 = sbr.rel (0) target = $region17
    $region16: #{lr_forward.1} parent=1 // pred_region
      %27 = dma.done [#allocation3], 8192
    $region17: #{lr_forward.1} parent=1 // pred_fallthru
      _
    %v28 = vld [vmem:[%s0] sm:$0xf]
    %v29 = vmax.f32 %v28, 0.0
    %v30 = vld [vmem:[#allocation2] sm:$0xff]
    %v31 = vld [vmem:[#allocation2 + $0x8] sm:$0xff]
    %v32 = vld [vmem:[#allocation2 + $0x10] sm:$0xff]
    %v33 = vld [vmem:[#allocation2 + $0x18] sm:$0xff]
    %v34 = vld [vmem:[#allocation2 + $0x20] sm:$0xff]
    %v35 = vld [vmem:[#allocation2 + $0x28] sm:$0xff]
    %v36 = vld [vmem:[#allocation2 + $0x30] sm:$0xff]
    %v37 = vld [vmem:[#allocation2 + $0x38] sm:$0xff]
    %v38 = vld [vmem:[#allocation2 + $0x40] sm:$0xff]
    %v39 = vld [vmem:[#allocation2 + $0x48] sm:$0xff]
    %v40 = vld [vmem:[#allocation2 + $0x50] sm:$0xff]
    %v41 = vld [vmem:[#allocation2 + $0x58] sm:$0xff]
    %v42 = vld [vmem:[#allocation2 + $0x60] sm:$0xff]
    %v43 = vld [vmem:[#allocation2 + $0x68] sm:$0xff]
    %v44 = vld [vmem:[#allocation2 + $0x70] sm:$0xff]
    %v45 = vld [vmem:[#allocation2 + $0x78] sm:$0xff]
    %v46 = vld [vmem:[#allocation2 + $0x80] sm:$0xff]
    %v47 = vld [vmem:[#allocation2 + $0x88] sm:$0xff]
    %v48 = vld [vmem:[#allocation2 + $0x90] sm:$0xff]
    %v49 = vld [vmem:[#allocation2 + $0x98] sm:$0xff]
    %v50 = vld [vmem:[#allocation2 + $0xa0] sm:$0xff]
    %v51 = vld [vmem:[#allocation2 + $0xa8] sm:$0xff]
    %v52 = vld [vmem:[#allocation2 + $0xb0] sm:$0xff]
    %v53 = vld [vmem:[#allocation2 + $0xb8] sm:$0xff]
    %v54 = vld [vmem:[#allocation2 + $0xc0] sm:$0xff]
    %v55 = vld [vmem:[#allocation2 + $0xc8] sm:$0xff]
    %v56 = vld [vmem:[#allocation2 + $0xd0] sm:$0xff]
    %v57 = vld [vmem:[#allocation2 + $0xd8] sm:$0xff]
    %v58 = vld [vmem:[#allocation2 + $0xe0] sm:$0xff]
    %v59 = vld [vmem:[#allocation2 + $0xe8] sm:$0xff]
    %v60 = vld [vmem:[#allocation2 + $0xf0] sm:$0xff]
    %v61 = vld [vmem:[#allocation2 + $0xf8] sm:$0xff]
    %v62 = vld [vmem:[#allocation2 + $0x100] sm:$0xff]
    %v63 = vld [vmem:[#allocation2 + $0x108] sm:$0xff]
    %v64 = vld [vmem:[#allocation2 + $0x110] sm:$0xff]
    %v65 = vld [vmem:[#allocation2 + $0x118] sm:$0xff]
    %v66 = vld [vmem:[#allocation2 + $0x120] sm:$0xff]
    %v67 = vld [vmem:[#allocation2 + $0x128] sm:$0xff]
    %v68 = vld [vmem:[#allocation2 + $0x130] sm:$0xff]
    %v69 = vld [vmem:[#allocation2 + $0x138] sm:$0xff]
    %v70 = vld [vmem:[#allocation2 + $0x140] sm:$0xff]
    %v71 = vld [vmem:[#allocation2 + $0x148] sm:$0xff]
    %v72 = vld [vmem:[#allocation2 + $0x150] sm:$0xff]
    %v73 = vld [vmem:[#allocation2 + $0x158] sm:$0xff]
    %v74 = vld [vmem:[#allocation2 + $0x160] sm:$0xff]
    %v75 = vld [vmem:[#allocation2 + $0x168] sm:$0xff]
    %v76 = vld [vmem:[#allocation2 + $0x170] sm:$0xff]
    %v77 = vld [vmem:[#allocation2 + $0x178] sm:$0xff]
    %v78 = vld [vmem:[#allocation2 + $0x180] sm:$0xff]
    %v79 = vld [vmem:[#allocation2 + $0x188] sm:$0xff]
    %v80 = vld [vmem:[#allocation2 + $0x190] sm:$0xff]
    %v81 = vld [vmem:[#allocation2 + $0x198] sm:$0xff]
    %v82 = vld [vmem:[#allocation2 + $0x1a0] sm:$0xff]
    %v83 = vld [vmem:[#allocation2 + $0x1a8] sm:$0xff]
    %v84 = vld [vmem:[#allocation2 + $0x1b0] sm:$0xff]
    %v85 = vld [vmem:[#allocation2 + $0x1b8] sm:$0xff]
    %v86 = vld [vmem:[#allocation2 + $0x1c0] sm:$0xff]
    %v87 = vld [vmem:[#allocation2 + $0x1c8] sm:$0xff]
    %v88 = vld [vmem:[#allocation2 + $0x1d0] sm:$0xff]
    %v89 = vld [vmem:[#allocation2 + $0x1d8] sm:$0xff]
    %v90 = vld [vmem:[#allocation2 + $0x1e0] sm:$0xff]
    %v91 = vld [vmem:[#allocation2 + $0x1e8] sm:$0xff]
    %v92 = vld [vmem:[#allocation2 + $0x1f0] sm:$0xff]
    %v93 = vld [vmem:[#allocation2 + $0x1f8] sm:$0xff]
    %v94 = vld [vmem:[%s2] sm:$0x1]
    %v96 = vlaneseq
    %v97 = vshrl.u32 %v96, 7
    %v98 = vsub.s32 0, %v97
    %v99 = vrot.slane %v29, %v98
    %v100 = vlaneseq
    %v101 = vshrl.u32 %v100, 7
    %v102 = vsub.s32 1, %v101
    %v103 = vrot.slane %v29, %v102
    %v104 = vlaneseq
    %v105 = vshrl.u32 %v104, 7
    %v106 = vsub.s32 2, %v105
    %v107 = vrot.slane %v29, %v106
    %v108 = vlaneseq
    %v109 = vshrl.u32 %v108, 7
    %v110 = vsub.s32 3, %v109
    %v111 = vrot.slane %v29, %v110
    %116 = vmatprep.subr.mxu0 0.0
    %v117 = vand.u32 %v30, 4294901760
    %118 = vmatpush1.msra.mxu0 %v117
    %119 = vmatprep.subr.mxu0 0.0
    %v120 = vand.u32 %v31, 4294901760
    %121 = vmatpush1.msra.mxu0 %v120
    %122 = vmatprep.subr.mxu0 0.0
    %v123 = vand.u32 %v32, 4294901760
    %124 = vmatpush1.msra.mxu0 %v123
    %125 = vmatprep.subr.mxu0 0.0
    %v126 = vand.u32 %v33, 4294901760
    %127 = vmatpush1.msra.mxu0 %v126
    %128 = vmatprep.subr.mxu0 0.0
    %v129 = vand.u32 %v34, 4294901760
    %130 = vmatpush1.msra.mxu0 %v129
    %131 = vmatprep.subr.mxu0 0.0
    %v132 = vand.u32 %v35, 4294901760
    %133 = vmatpush1.msra.mxu0 %v132
    %134 = vmatprep.subr.mxu0 0.0
    %v135 = vand.u32 %v36, 4294901760
    %136 = vmatpush1.msra.mxu0 %v135
    %137 = vmatprep.subr.mxu0 0.0
    %v138 = vand.u32 %v37, 4294901760
    %139 = vmatpush1.msra.mxu0 %v138
    %140 = vmatprep.subr.mxu0 0.0
    %v141 = vand.u32 %v38, 4294901760
    %142 = vmatpush1.msra.mxu0 %v141
    %143 = vmatprep.subr.mxu0 0.0
    %v144 = vand.u32 %v39, 4294901760
    %145 = vmatpush1.msra.mxu0 %v144
    %146 = vmatprep.subr.mxu0 0.0
    %v147 = vand.u32 %v40, 4294901760
    %148 = vmatpush1.msra.mxu0 %v147
    %149 = vmatprep.subr.mxu0 0.0
    %v150 = vand.u32 %v41, 4294901760
    %151 = vmatpush1.msra.mxu0 %v150
    %152 = vmatprep.subr.mxu0 0.0
    %v153 = vand.u32 %v42, 4294901760
    %154 = vmatpush1.msra.mxu0 %v153
    %155 = vmatprep.subr.mxu0 0.0
    %v156 = vand.u32 %v43, 4294901760
    %157 = vmatpush1.msra.mxu0 %v156
    %158 = vmatprep.subr.mxu0 0.0
    %v159 = vand.u32 %v44, 4294901760
    %160 = vmatpush1.msra.mxu0 %v159
    %161 = vmatprep.subr.mxu0 0.0
    %v162 = vand.u32 %v45, 4294901760
    %163 = vmatpush1.msra.mxu0 %v162
    %164 = vmatprep.subr.mxu0 0.0
    %v165 = vand.u32 %v46, 4294901760
    %166 = vmatpush1.msra.mxu0 %v165
    %167 = vmatprep.subr.mxu0 0.0
    %v168 = vand.u32 %v47, 4294901760
    %169 = vmatpush1.msra.mxu0 %v168
    %170 = vmatprep.subr.mxu0 0.0
    %v171 = vand.u32 %v48, 4294901760
    %172 = vmatpush1.msra.mxu0 %v171
    %173 = vmatprep.subr.mxu0 0.0
    %v174 = vand.u32 %v49, 4294901760
    %175 = vmatpush1.msra.mxu0 %v174
    %176 = vmatprep.subr.mxu0 0.0
    %v177 = vand.u32 %v50, 4294901760
    %178 = vmatpush1.msra.mxu0 %v177
    %179 = vmatprep.subr.mxu0 0.0
    %v180 = vand.u32 %v51, 4294901760
    %181 = vmatpush1.msra.mxu0 %v180
    %182 = vmatprep.subr.mxu0 0.0
    %v183 = vand.u32 %v52, 4294901760
    %184 = vmatpush1.msra.mxu0 %v183
    %185 = vmatprep.subr.mxu0 0.0
    %v186 = vand.u32 %v53, 4294901760
    %187 = vmatpush1.msra.mxu0 %v186
    %188 = vmatprep.subr.mxu0 0.0
    %v189 = vand.u32 %v54, 4294901760
    %190 = vmatpush1.msra.mxu0 %v189
    %191 = vmatprep.subr.mxu0 0.0
    %v192 = vand.u32 %v55, 4294901760
    %193 = vmatpush1.msra.mxu0 %v192
    %194 = vmatprep.subr.mxu0 0.0
    %v195 = vand.u32 %v56, 4294901760
    %196 = vmatpush1.msra.mxu0 %v195
    %197 = vmatprep.subr.mxu0 0.0
    %v198 = vand.u32 %v57, 4294901760
    %199 = vmatpush1.msra.mxu0 %v198
    %200 = vmatprep.subr.mxu0 0.0
    %v201 = vand.u32 %v58, 4294901760
    %202 = vmatpush1.msra.mxu0 %v201
    %203 = vmatprep.subr.mxu0 0.0
    %v204 = vand.u32 %v59, 4294901760
    %205 = vmatpush1.msra.mxu0 %v204
    %206 = vmatprep.subr.mxu0 0.0
    %v207 = vand.u32 %v60, 4294901760
    %208 = vmatpush1.msra.mxu0 %v207
    %209 = vmatprep.subr.mxu0 0.0
    %v210 = vand.u32 %v61, 4294901760
    %211 = vmatpush1.msra.mxu0 %v210
    %v212 = vand.u32 %v103, 4294901760
    %v213 = vsub.f32 %v103, %v212
    %v214 = vand.u32 %v213, 4294901760
    %v215 = vsub.f32 %v213, %v214
    %v216 = vand.u32 %v215, 4294901760
    %217 = vmatprep.mubr.f32.mxu0 %v216
    %v218 = vand.u32 %v99, 4294901760
    %v219 = vsub.f32 %v99, %v218
    %v220 = vand.u32 %v219, 4294901760
    %v221 = vsub.f32 %v219, %v220
    %v222 = vand.u32 %v221, 4294901760
    %223 = vmatmul.mubr.f32.gmra.mrb[0].mxu0 %v222
    %v224 = vpop.f32.mrb[0].mxu0
    %v225 = vadd.f32 %v94, %v224
    %v226 = vpop.f32.mrb[0].mxu0
    %227 = vdwg.mxu0
    %228 = vmatprep.subr.mxu0 0.0
    %v229 = vand.u32 %v30, 4294901760
    %v230 = vsub.f32 %v30, %v229
    %v231 = vand.u32 %v230, 4294901760
    %v232 = vsub.f32 %v230, %v231
    %v233 = vand.u32 %v232, 4294901760
    %234 = vmatpush1.msra.mxu0 %v233
    %235 = vmatprep.subr.mxu0 0.0
    %v236 = vand.u32 %v31, 4294901760
    %v237 = vsub.f32 %v31, %v236
    %v238 = vand.u32 %v237, 4294901760
    %v239 = vsub.f32 %v237, %v238
    %v240 = vand.u32 %v239, 4294901760
    %241 = vmatpush1.msra.mxu0 %v240
    %242 = vmatprep.subr.mxu0 0.0
    %v243 = vand.u32 %v32, 4294901760
    %v244 = vsub.f32 %v32, %v243
    %v245 = vand.u32 %v244, 4294901760
    %v246 = vsub.f32 %v244, %v245
    %v247 = vand.u32 %v246, 4294901760
    %248 = vmatpush1.msra.mxu0 %v247
    %249 = vmatprep.subr.mxu0 0.0
    %v250 = vand.u32 %v33, 4294901760
    %v251 = vsub.f32 %v33, %v250
    %v252 = vand.u32 %v251, 4294901760
    %v253 = vsub.f32 %v251, %v252
    %v254 = vand.u32 %v253, 4294901760
    %255 = vmatpush1.msra.mxu0 %v254
    %256 = vmatprep.subr.mxu0 0.0
    %v257 = vand.u32 %v34, 4294901760
    %v258 = vsub.f32 %v34, %v257
    %v259 = vand.u32 %v258, 4294901760
    %v260 = vsub.f32 %v258, %v259
    %v261 = vand.u32 %v260, 4294901760
    %262 = vmatpush1.msra.mxu0 %v261
    %263 = vmatprep.subr.mxu0 0.0
    %v264 = vand.u32 %v35, 4294901760
    %v265 = vsub.f32 %v35, %v264
    %v266 = vand.u32 %v265, 4294901760
    %v267 = vsub.f32 %v265, %v266
    %v268 = vand.u32 %v267, 4294901760
    %269 = vmatpush1.msra.mxu0 %v268
    %270 = vmatprep.subr.mxu0 0.0
    %v271 = vand.u32 %v36, 4294901760
    %v272 = vsub.f32 %v36, %v271
    %v273 = vand.u32 %v272, 4294901760
    %v274 = vsub.f32 %v272, %v273
    %v275 = vand.u32 %v274, 4294901760
    %276 = vmatpush1.msra.mxu0 %v275
    %277 = vmatprep.subr.mxu0 0.0
    %v278 = vand.u32 %v37, 4294901760
    %v279 = vsub.f32 %v37, %v278
    %v280 = vand.u32 %v279, 4294901760
    %v281 = vsub.f32 %v279, %v280
    %v282 = vand.u32 %v281, 4294901760
    %283 = vmatpush1.msra.mxu0 %v282
    %284 = vmatprep.subr.mxu0 0.0
    %v285 = vand.u32 %v38, 4294901760
    %v286 = vsub.f32 %v38, %v285
    %v287 = vand.u32 %v286, 4294901760
    %v288 = vsub.f32 %v286, %v287
    %v289 = vand.u32 %v288, 4294901760
    %290 = vmatpush1.msra.mxu0 %v289
    %291 = vmatprep.subr.mxu0 0.0
    %v292 = vand.u32 %v39, 4294901760
    %v293 = vsub.f32 %v39, %v292
    %v294 = vand.u32 %v293, 4294901760
    %v295 = vsub.f32 %v293, %v294
    %v296 = vand.u32 %v295, 4294901760
    %297 = vmatpush1.msra.mxu0 %v296
    %298 = vmatprep.subr.mxu0 0.0
    %v299 = vand.u32 %v40, 4294901760
    %v300 = vsub.f32 %v40, %v299
    %v301 = vand.u32 %v300, 4294901760
    %v302 = vsub.f32 %v300, %v301
    %v303 = vand.u32 %v302, 4294901760
    %304 = vmatpush1.msra.mxu0 %v303
    %305 = vmatprep.subr.mxu0 0.0
    %v306 = vand.u32 %v41, 4294901760
    %v307 = vsub.f32 %v41, %v306
    %v308 = vand.u32 %v307, 4294901760
    %v309 = vsub.f32 %v307, %v308
    %v310 = vand.u32 %v309, 4294901760
    %311 = vmatpush1.msra.mxu0 %v310
    %312 = vmatprep.subr.mxu0 0.0
    %v313 = vand.u32 %v42, 4294901760
    %v314 = vsub.f32 %v42, %v313
    %v315 = vand.u32 %v314, 4294901760
    %v316 = vsub.f32 %v314, %v315
    %v317 = vand.u32 %v316, 4294901760
    %318 = vmatpush1.msra.mxu0 %v317
    %319 = vmatprep.subr.mxu0 0.0
    %v320 = vand.u32 %v43, 4294901760
    %v321 = vsub.f32 %v43, %v320
    %v322 = vand.u32 %v321, 4294901760
    %v323 = vsub.f32 %v321, %v322
    %v324 = vand.u32 %v323, 4294901760
    %325 = vmatpush1.msra.mxu0 %v324
    %326 = vmatprep.subr.mxu0 0.0
    %v327 = vand.u32 %v44, 4294901760
    %v328 = vsub.f32 %v44, %v327
    %v329 = vand.u32 %v328, 4294901760
    %v330 = vsub.f32 %v328, %v329
    %v331 = vand.u32 %v330, 4294901760
    %332 = vmatpush1.msra.mxu0 %v331
    %333 = vmatprep.subr.mxu0 0.0
    %v334 = vand.u32 %v45, 4294901760
    %v335 = vsub.f32 %v45, %v334
    %v336 = vand.u32 %v335, 4294901760
    %v337 = vsub.f32 %v335, %v336
    %v338 = vand.u32 %v337, 4294901760
    %339 = vmatpush1.msra.mxu0 %v338
    %340 = vmatprep.subr.mxu0 0.0
    %v341 = vand.u32 %v46, 4294901760
    %v342 = vsub.f32 %v46, %v341
    %v343 = vand.u32 %v342, 4294901760
    %v344 = vsub.f32 %v342, %v343
    %v345 = vand.u32 %v344, 4294901760
    %346 = vmatpush1.msra.mxu0 %v345
    %347 = vmatprep.subr.mxu0 0.0
    %v348 = vand.u32 %v47, 4294901760
    %v349 = vsub.f32 %v47, %v348
    %v350 = vand.u32 %v349, 4294901760
    %v351 = vsub.f32 %v349, %v350
    %v352 = vand.u32 %v351, 4294901760
    %353 = vmatpush1.msra.mxu0 %v352
    %354 = vmatprep.subr.mxu0 0.0
    %v355 = vand.u32 %v48, 4294901760
    %v356 = vsub.f32 %v48, %v355
    %v357 = vand.u32 %v356, 4294901760
    %v358 = vsub.f32 %v356, %v357
    %v359 = vand.u32 %v358, 4294901760
    %360 = vmatpush1.msra.mxu0 %v359
    %361 = vmatprep.subr.mxu0 0.0
    %v362 = vand.u32 %v49, 4294901760
    %v363 = vsub.f32 %v49, %v362
    %v364 = vand.u32 %v363, 4294901760
    %v365 = vsub.f32 %v363, %v364
    %v366 = vand.u32 %v365, 4294901760
    %367 = vmatpush1.msra.mxu0 %v366
    %368 = vmatprep.subr.mxu0 0.0
    %v369 = vand.u32 %v50, 4294901760
    %v370 = vsub.f32 %v50, %v369
    %v371 = vand.u32 %v370, 4294901760
    %v372 = vsub.f32 %v370, %v371
    %v373 = vand.u32 %v372, 4294901760
    %374 = vmatpush1.msra.mxu0 %v373
    %375 = vmatprep.subr.mxu0 0.0
    %v376 = vand.u32 %v51, 4294901760
    %v377 = vsub.f32 %v51, %v376
    %v378 = vand.u32 %v377, 4294901760
    %v379 = vsub.f32 %v377, %v378
    %v380 = vand.u32 %v379, 4294901760
    %381 = vmatpush1.msra.mxu0 %v380
    %382 = vmatprep.subr.mxu0 0.0
    %v383 = vand.u32 %v52, 4294901760
    %v384 = vsub.f32 %v52, %v383
    %v385 = vand.u32 %v384, 4294901760
    %v386 = vsub.f32 %v384, %v385
    %v387 = vand.u32 %v386, 4294901760
    %388 = vmatpush1.msra.mxu0 %v387
    %389 = vmatprep.subr.mxu0 0.0
    %v390 = vand.u32 %v53, 4294901760
    %v391 = vsub.f32 %v53, %v390
    %v392 = vand.u32 %v391, 4294901760
    %v393 = vsub.f32 %v391, %v392
    %v394 = vand.u32 %v393, 4294901760
    %395 = vmatpush1.msra.mxu0 %v394
    %396 = vmatprep.subr.mxu0 0.0
    %v397 = vand.u32 %v54, 4294901760
    %v398 = vsub.f32 %v54, %v397
    %v399 = vand.u32 %v398, 4294901760
    %v400 = vsub.f32 %v398, %v399
    %v401 = vand.u32 %v400, 4294901760
    %402 = vmatpush1.msra.mxu0 %v401
    %403 = vmatprep.subr.mxu0 0.0
    %v404 = vand.u32 %v55, 4294901760
    %v405 = vsub.f32 %v55, %v404
    %v406 = vand.u32 %v405, 4294901760
    %v407 = vsub.f32 %v405, %v406
    %v408 = vand.u32 %v407, 4294901760
    %409 = vmatpush1.msra.mxu0 %v408
    %410 = vmatprep.subr.mxu0 0.0
    %v411 = vand.u32 %v56, 4294901760
    %v412 = vsub.f32 %v56, %v411
    %v413 = vand.u32 %v412, 4294901760
    %v414 = vsub.f32 %v412, %v413
    %v415 = vand.u32 %v414, 4294901760
    %416 = vmatpush1.msra.mxu0 %v415
    %417 = vmatprep.subr.mxu0 0.0
    %v418 = vand.u32 %v57, 4294901760
    %v419 = vsub.f32 %v57, %v418
    %v420 = vand.u32 %v419, 4294901760
    %v421 = vsub.f32 %v419, %v420
    %v422 = vand.u32 %v421, 4294901760
    %423 = vmatpush1.msra.mxu0 %v422
    %424 = vmatprep.subr.mxu0 0.0
    %v425 = vand.u32 %v58, 4294901760
    %v426 = vsub.f32 %v58, %v425
    %v427 = vand.u32 %v426, 4294901760
    %v428 = vsub.f32 %v426, %v427
    %v429 = vand.u32 %v428, 4294901760
    %430 = vmatpush1.msra.mxu0 %v429
    %431 = vmatprep.subr.mxu0 0.0
    %v432 = vand.u32 %v59, 4294901760
    %v433 = vsub.f32 %v59, %v432
    %v434 = vand.u32 %v433, 4294901760
    %v435 = vsub.f32 %v433, %v434
    %v436 = vand.u32 %v435, 4294901760
    %437 = vmatpush1.msra.mxu0 %v436
    %438 = vmatprep.subr.mxu0 0.0
    %v439 = vand.u32 %v60, 4294901760
    %v440 = vsub.f32 %v60, %v439
    %v441 = vand.u32 %v440, 4294901760
    %v442 = vsub.f32 %v440, %v441
    %v443 = vand.u32 %v442, 4294901760
    %444 = vmatpush1.msra.mxu0 %v443
    %445 = vmatprep.subr.mxu0 0.0
    %v446 = vand.u32 %v61, 4294901760
    %v447 = vsub.f32 %v61, %v446
    %v448 = vand.u32 %v447, 4294901760
    %v449 = vsub.f32 %v447, %v448
    %v450 = vand.u32 %v449, 4294901760
    %451 = vmatpush1.msra.mxu0 %v450
    %v452 = vand.u32 %v103, 4294901760
    %453 = vmatprep.mubr.f32.mxu0 %v452
    %v454 = vand.u32 %v99, 4294901760
    %455 = vmatmul.mubr.f32.gmra.mrb[0].mxu0 %v454
    %v456 = vpop.f32.mrb[0].mxu0
    %v457 = vadd.f32 %v225, %v456
    %v458 = vpop.f32.mrb[0].mxu0
    %459 = vdwg.mxu0
    %460 = vmatprep.subr.mxu0 0.0
    %v461 = vand.u32 %v30, 4294901760
    %v462 = vsub.f32 %v30, %v461
    %463 = vmatpush1.msra.mxu0 %v462
    %464 = vmatprep.subr.mxu0 0.0
    %v465 = vand.u32 %v31, 4294901760
    %v466 = vsub.f32 %v31, %v465
    %467 = vmatpush1.msra.mxu0 %v466
    %468 = vmatprep.subr.mxu0 0.0
    %v469 = vand.u32 %v32, 4294901760
    %v470 = vsub.f32 %v32, %v469
    %471 = vmatpush1.msra.mxu0 %v470
    %472 = vmatprep.subr.mxu0 0.0
    %v473 = vand.u32 %v33, 4294901760
    %v474 = vsub.f32 %v33, %v473
    %475 = vmatpush1.msra.mxu0 %v474
    %476 = vmatprep.subr.mxu0 0.0
    %v477 = vand.u32 %v34, 4294901760
    %v478 = vsub.f32 %v34, %v477
    %479 = vmatpush1.msra.mxu0 %v478
    %480 = vmatprep.subr.mxu0 0.0
    %v481 = vand.u32 %v35, 4294901760
    %v482 = vsub.f32 %v35, %v481
    %483 = vmatpush1.msra.mxu0 %v482
    %484 = vmatprep.subr.mxu0 0.0
    %v485 = vand.u32 %v36, 4294901760
    %v486 = vsub.f32 %v36, %v485
    %487 = vmatpush1.msra.mxu0 %v486
    %488 = vmatprep.subr.mxu0 0.0
    %v489 = vand.u32 %v37, 4294901760
    %v490 = vsub.f32 %v37, %v489
    %491 = vmatpush1.msra.mxu0 %v490
    %492 = vmatprep.subr.mxu0 0.0
    %v493 = vand.u32 %v38, 4294901760
    %v494 = vsub.f32 %v38, %v493
    %495 = vmatpush1.msra.mxu0 %v494
    %496 = vmatprep.subr.mxu0 0.0
    %v497 = vand.u32 %v39, 4294901760
    %v498 = vsub.f32 %v39, %v497
    %499 = vmatpush1.msra.mxu0 %v498
    %500 = vmatprep.subr.mxu0 0.0
    %v501 = vand.u32 %v40, 4294901760
    %v502 = vsub.f32 %v40, %v501
    %503 = vmatpush1.msra.mxu0 %v502
    %504 = vmatprep.subr.mxu0 0.0
    %v505 = vand.u32 %v41, 4294901760
    %v506 = vsub.f32 %v41, %v505
    %507 = vmatpush1.msra.mxu0 %v506
    %508 = vmatprep.subr.mxu0 0.0
    %v509 = vand.u32 %v42, 4294901760
    %v510 = vsub.f32 %v42, %v509
    %511 = vmatpush1.msra.mxu0 %v510
    %512 = vmatprep.subr.mxu0 0.0
    %v513 = vand.u32 %v43, 4294901760
    %v514 = vsub.f32 %v43, %v513
    %515 = vmatpush1.msra.mxu0 %v514
    %516 = vmatprep.subr.mxu0 0.0
    %v517 = vand.u32 %v44, 4294901760
    %v518 = vsub.f32 %v44, %v517
    %519 = vmatpush1.msra.mxu0 %v518
    %520 = vmatprep.subr.mxu0 0.0
    %v521 = vand.u32 %v45, 4294901760
    %v522 = vsub.f32 %v45, %v521
    %523 = vmatpush1.msra.mxu0 %v522
    %524 = vmatprep.subr.mxu0 0.0
    %v525 = vand.u32 %v46, 4294901760
    %v526 = vsub.f32 %v46, %v525
    %527 = vmatpush1.msra.mxu0 %v526
    %528 = vmatprep.subr.mxu0 0.0
    %v529 = vand.u32 %v47, 4294901760
    %v530 = vsub.f32 %v47, %v529
    %531 = vmatpush1.msra.mxu0 %v530
    %532 = vmatprep.subr.mxu0 0.0
    %v533 = vand.u32 %v48, 4294901760
    %v534 = vsub.f32 %v48, %v533
    %535 = vmatpush1.msra.mxu0 %v534
    %536 = vmatprep.subr.mxu0 0.0
    %v537 = vand.u32 %v49, 4294901760
    %v538 = vsub.f32 %v49, %v537
    %539 = vmatpush1.msra.mxu0 %v538
    %540 = vmatprep.subr.mxu0 0.0
    %v541 = vand.u32 %v50, 4294901760
    %v542 = vsub.f32 %v50, %v541
    %543 = vmatpush1.msra.mxu0 %v542
    %544 = vmatprep.subr.mxu0 0.0
    %v545 = vand.u32 %v51, 4294901760
    %v546 = vsub.f32 %v51, %v545
    %547 = vmatpush1.msra.mxu0 %v546
    %548 = vmatprep.subr.mxu0 0.0
    %v549 = vand.u32 %v52, 4294901760
    %v550 = vsub.f32 %v52, %v549
    %551 = vmatpush1.msra.mxu0 %v550
    %552 = vmatprep.subr.mxu0 0.0
    %v553 = vand.u32 %v53, 4294901760
    %v554 = vsub.f32 %v53, %v553
    %555 = vmatpush1.msra.mxu0 %v554
    %556 = vmatprep.subr.mxu0 0.0
    %v557 = vand.u32 %v54, 4294901760
    %v558 = vsub.f32 %v54, %v557
    %559 = vmatpush1.msra.mxu0 %v558
    %560 = vmatprep.subr.mxu0 0.0
    %v561 = vand.u32 %v55, 4294901760
    %v562 = vsub.f32 %v55, %v561
    %563 = vmatpush1.msra.mxu0 %v562
    %564 = vmatprep.subr.mxu0 0.0
    %v565 = vand.u32 %v56, 4294901760
    %v566 = vsub.f32 %v56, %v565
    %567 = vmatpush1.msra.mxu0 %v566
    %568 = vmatprep.subr.mxu0 0.0
    %v569 = vand.u32 %v57, 4294901760
    %v570 = vsub.f32 %v57, %v569
    %571 = vmatpush1.msra.mxu0 %v570
    %572 = vmatprep.subr.mxu0 0.0
    %v573 = vand.u32 %v58, 4294901760
    %v574 = vsub.f32 %v58, %v573
    %575 = vmatpush1.msra.mxu0 %v574
    %576 = vmatprep.subr.mxu0 0.0
    %v577 = vand.u32 %v59, 4294901760
    %v578 = vsub.f32 %v59, %v577
    %579 = vmatpush1.msra.mxu0 %v578
    %580 = vmatprep.subr.mxu0 0.0
    %v581 = vand.u32 %v60, 4294901760
    %v582 = vsub.f32 %v60, %v581
    %583 = vmatpush1.msra.mxu0 %v582
    %584 = vmatprep.subr.mxu0 0.0
    %v585 = vand.u32 %v61, 4294901760
    %v586 = vsub.f32 %v61, %v585
    %587 = vmatpush1.msra.mxu0 %v586
    %v588 = vand.u32 %v103, 4294901760
    %v589 = vsub.f32 %v103, %v588
    %590 = vmatprep.mubr.f32.mxu0 %v589
    %v591 = vand.u32 %v99, 4294901760
    %v592 = vsub.f32 %v99, %v591
    %593 = vmatmul.mubr.f32.gmra.mrb[0].mxu0 %v592
    %v594 = vpop.f32.mrb[0].mxu0
    %v595 = vadd.f32 %v457, %v594
    %v596 = vpop.f32.mrb[0].mxu0
    %597 = vdwg.mxu0
    %598 = vmatprep.subr.mxu0 0.0
    %v599 = vand.u32 %v30, 4294901760
    %600 = vmatpush1.msra.mxu0 %v599
    %601 = vmatprep.subr.mxu0 0.0
    %v602 = vand.u32 %v31, 4294901760
    %603 = vmatpush1.msra.mxu0 %v602
    %604 = vmatprep.subr.mxu0 0.0
    %v605 = vand.u32 %v32, 4294901760
    %606 = vmatpush1.msra.mxu0 %v605
    %607 = vmatprep.subr.mxu0 0.0
    %v608 = vand.u32 %v33, 4294901760
    %609 = vmatpush1.msra.mxu0 %v608
    %610 = vmatprep.subr.mxu0 0.0
    %v611 = vand.u32 %v34, 4294901760
    %612 = vmatpush1.msra.mxu0 %v611
    %613 = vmatprep.subr.mxu0 0.0
    %v614 = vand.u32 %v35, 4294901760
    %615 = vmatpush1.msra.mxu0 %v614
    %616 = vmatprep.subr.mxu0 0.0
    %v617 = vand.u32 %v36, 4294901760
    %618 = vmatpush1.msra.mxu0 %v617
    %619 = vmatprep.subr.mxu0 0.0
    %v620 = vand.u32 %v37, 4294901760
    %621 = vmatpush1.msra.mxu0 %v620
    %622 = vmatprep.subr.mxu0 0.0
    %v623 = vand.u32 %v38, 4294901760
    %624 = vmatpush1.msra.mxu0 %v623
    %625 = vmatprep.subr.mxu0 0.0
    %v626 = vand.u32 %v39, 4294901760
    %627 = vmatpush1.msra.mxu0 %v626
    %628 = vmatprep.subr.mxu0 0.0
    %v629 = vand.u32 %v40, 4294901760
    %630 = vmatpush1.msra.mxu0 %v629
    %631 = vmatprep.subr.mxu0 0.0
    %v632 = vand.u32 %v41, 4294901760
    %633 = vmatpush1.msra.mxu0 %v632
    %634 = vmatprep.subr.mxu0 0.0
    %v635 = vand.u32 %v42, 4294901760
    %636 = vmatpush1.msra.mxu0 %v635
    %637 = vmatprep.subr.mxu0 0.0
    %v638 = vand.u32 %v43, 4294901760
    %639 = vmatpush1.msra.mxu0 %v638
    %640 = vmatprep.subr.mxu0 0.0
    %v641 = vand.u32 %v44, 4294901760
    %642 = vmatpush1.msra.mxu0 %v641
    %643 = vmatprep.subr.mxu0 0.0
    %v644 = vand.u32 %v45, 4294901760
    %645 = vmatpush1.msra.mxu0 %v644
    %646 = vmatprep.subr.mxu0 0.0
    %v647 = vand.u32 %v46, 4294901760
    %648 = vmatpush1.msra.mxu0 %v647
    %649 = vmatprep.subr.mxu0 0.0
    %v650 = vand.u32 %v47, 4294901760
    %651 = vmatpush1.msra.mxu0 %v650
    %652 = vmatprep.subr.mxu0 0.0
    %v653 = vand.u32 %v48, 4294901760
    %654 = vmatpush1.msra.mxu0 %v653
    %655 = vmatprep.subr.mxu0 0.0
    %v656 = vand.u32 %v49, 4294901760
    %657 = vmatpush1.msra.mxu0 %v656
    %658 = vmatprep.subr.mxu0 0.0
    %v659 = vand.u32 %v50, 4294901760
    %660 = vmatpush1.msra.mxu0 %v659
    %661 = vmatprep.subr.mxu0 0.0
    %v662 = vand.u32 %v51, 4294901760
    %663 = vmatpush1.msra.mxu0 %v662
    %664 = vmatprep.subr.mxu0 0.0
    %v665 = vand.u32 %v52, 4294901760
    %666 = vmatpush1.msra.mxu0 %v665
    %667 = vmatprep.subr.mxu0 0.0
    %v668 = vand.u32 %v53, 4294901760
    %669 = vmatpush1.msra.mxu0 %v668
    %670 = vmatprep.subr.mxu0 0.0
    %v671 = vand.u32 %v54, 4294901760
    %672 = vmatpush1.msra.mxu0 %v671
    %673 = vmatprep.subr.mxu0 0.0
    %v674 = vand.u32 %v55, 4294901760
    %675 = vmatpush1.msra.mxu0 %v674
    %676 = vmatprep.subr.mxu0 0.0
    %v677 = vand.u32 %v56, 4294901760
    %678 = vmatpush1.msra.mxu0 %v677
    %679 = vmatprep.subr.mxu0 0.0
    %v680 = vand.u32 %v57, 4294901760
    %681 = vmatpush1.msra.mxu0 %v680
    %682 = vmatprep.subr.mxu0 0.0
    %v683 = vand.u32 %v58, 4294901760
    %684 = vmatpush1.msra.mxu0 %v683
    %685 = vmatprep.subr.mxu0 0.0
    %v686 = vand.u32 %v59, 4294901760
    %687 = vmatpush1.msra.mxu0 %v686
    %688 = vmatprep.subr.mxu0 0.0
    %v689 = vand.u32 %v60, 4294901760
    %690 = vmatpush1.msra.mxu0 %v689
    %691 = vmatprep.subr.mxu0 0.0
    %v692 = vand.u32 %v61, 4294901760
    %693 = vmatpush1.msra.mxu0 %v692
    %v694 = vand.u32 %v103, 4294901760
    %v695 = vsub.f32 %v103, %v694
    %v696 = vand.u32 %v695, 4294901760
    %697 = vmatprep.mubr.f32.mxu0 %v696
    %v698 = vand.u32 %v99, 4294901760
    %v699 = vsub.f32 %v99, %v698
    %v700 = vand.u32 %v699, 4294901760
    %701 = vmatmul.mubr.f32.gmra.mrb[0].mxu0 %v700
    %v702 = vpop.f32.mrb[0].mxu0
    %v703 = vadd.f32 %v595, %v702
    %v704 = vpop.f32.mrb[0].mxu0
    %705 = vdwg.mxu0
    %706 = vmatprep.subr.mxu0 0.0
    %v707 = vand.u32 %v30, 4294901760
    %v708 = vsub.f32 %v30, %v707
    %v709 = vand.u32 %v708, 4294901760
    %710 = vmatpush1.msra.mxu0 %v709
    %711 = vmatprep.subr.mxu0 0.0
    %v712 = vand.u32 %v31, 4294901760
    %v713 = vsub.f32 %v31, %v712
    %v714 = vand.u32 %v713, 4294901760
    %715 = vmatpush1.msra.mxu0 %v714
    %716 = vmatprep.subr.mxu0 0.0
    %v717 = vand.u32 %v32, 4294901760
    %v718 = vsub.f32 %v32, %v717
    %v719 = vand.u32 %v718, 4294901760
    %720 = vmatpush1.msra.mxu0 %v719
    %721 = vmatprep.subr.mxu0 0.0
    %v722 = vand.u32 %v33, 4294901760
    %v723 = vsub.f32 %v33, %v722
    %v724 = vand.u32 %v723, 4294901760
    %725 = vmatpush1.msra.mxu0 %v724
    %726 = vmatprep.subr.mxu0 0.0
    %v727 = vand.u32 %v34, 4294901760
    %v728 = vsub.f32 %v34, %v727
    %v729 = vand.u32 %v728, 4294901760
    %730 = vmatpush1.msra.mxu0 %v729
    %731 = vmatprep.subr.mxu0 0.0
    %v732 = vand.u32 %v35, 4294901760
    %v733 = vsub.f32 %v35, %v732
    %v734 = vand.u32 %v733, 4294901760
    %735 = vmatpush1.msra.mxu0 %v734
    %736 = vmatprep.subr.mxu0 0.0
    %v737 = vand.u32 %v36, 4294901760
    %v738 = vsub.f32 %v36, %v737
    %v739 = vand.u32 %v738, 4294901760
    %740 = vmatpush1.msra.mxu0 %v739
    %741 = vmatprep.subr.mxu0 0.0
    %v742 = vand.u32 %v37, 4294901760
    %v743 = vsub.f32 %v37, %v742
    %v744 = vand.u32 %v743, 4294901760
    %745 = vmatpush1.msra.mxu0 %v744
    %746 = vmatprep.subr.mxu0 0.0
    %v747 = vand.u32 %v38, 4294901760
    %v748 = vsub.f32 %v38, %v747
    %v749 = vand.u32 %v748, 4294901760
    %750 = vmatpush1.msra.mxu0 %v749
    %751 = vmatprep.subr.mxu0 0.0
    %v752 = vand.u32 %v39, 4294901760
    %v753 = vsub.f32 %v39, %v752
    %v754 = vand.u32 %v753, 4294901760
    %755 = vmatpush1.msra.mxu0 %v754
    %756 = vmatprep.subr.mxu0 0.0
    %v757 = vand.u32 %v40, 4294901760
    %v758 = vsub.f32 %v40, %v757
    %v759 = vand.u32 %v758, 4294901760
    %760 = vmatpush1.msra.mxu0 %v759
    %761 = vmatprep.subr.mxu0 0.0
    %v762 = vand.u32 %v41, 4294901760
    %v763 = vsub.f32 %v41, %v762
    %v764 = vand.u32 %v763, 4294901760
    %765 = vmatpush1.msra.mxu0 %v764
    %766 = vmatprep.subr.mxu0 0.0
    %v767 = vand.u32 %v42, 4294901760
    %v768 = vsub.f32 %v42, %v767
    %v769 = vand.u32 %v768, 4294901760
    %770 = vmatpush1.msra.mxu0 %v769
    %771 = vmatprep.subr.mxu0 0.0
    %v772 = vand.u32 %v43, 4294901760
    %v773 = vsub.f32 %v43, %v772
    %v774 = vand.u32 %v773, 4294901760
    %775 = vmatpush1.msra.mxu0 %v774
    %776 = vmatprep.subr.mxu0 0.0
    %v777 = vand.u32 %v44, 4294901760
    %v778 = vsub.f32 %v44, %v777
    %v779 = vand.u32 %v778, 4294901760
    %780 = vmatpush1.msra.mxu0 %v779
    %781 = vmatprep.subr.mxu0 0.0
    %v782 = vand.u32 %v45, 4294901760
    %v783 = vsub.f32 %v45, %v782
    %v784 = vand.u32 %v783, 4294901760
    %785 = vmatpush1.msra.mxu0 %v784
    %786 = vmatprep.subr.mxu0 0.0
    %v787 = vand.u32 %v46, 4294901760
    %v788 = vsub.f32 %v46, %v787
    %v789 = vand.u32 %v788, 4294901760
    %790 = vmatpush1.msra.mxu0 %v789
    %791 = vmatprep.subr.mxu0 0.0
    %v792 = vand.u32 %v47, 4294901760
    %v793 = vsub.f32 %v47, %v792
    %v794 = vand.u32 %v793, 4294901760
    %795 = vmatpush1.msra.mxu0 %v794
    %796 = vmatprep.subr.mxu0 0.0
    %v797 = vand.u32 %v48, 4294901760
    %v798 = vsub.f32 %v48, %v797
    %v799 = vand.u32 %v798, 4294901760
    %800 = vmatpush1.msra.mxu0 %v799
    %801 = vmatprep.subr.mxu0 0.0
    %v802 = vand.u32 %v49, 4294901760
    %v803 = vsub.f32 %v49, %v802
    %v804 = vand.u32 %v803, 4294901760
    %805 = vmatpush1.msra.mxu0 %v804
    %806 = vmatprep.subr.mxu0 0.0
    %v807 = vand.u32 %v50, 4294901760
    %v808 = vsub.f32 %v50, %v807
    %v809 = vand.u32 %v808, 4294901760
    %810 = vmatpush1.msra.mxu0 %v809
    %811 = vmatprep.subr.mxu0 0.0
    %v812 = vand.u32 %v51, 4294901760
    %v813 = vsub.f32 %v51, %v812
    %v814 = vand.u32 %v813, 4294901760
    %815 = vmatpush1.msra.mxu0 %v814
    %816 = vmatprep.subr.mxu0 0.0
    %v817 = vand.u32 %v52, 4294901760
    %v818 = vsub.f32 %v52, %v817
    %v819 = vand.u32 %v818, 4294901760
    %820 = vmatpush1.msra.mxu0 %v819
    %821 = vmatprep.subr.mxu0 0.0
    %v822 = vand.u32 %v53, 4294901760
    %v823 = vsub.f32 %v53, %v822
    %v824 = vand.u32 %v823, 4294901760
    %825 = vmatpush1.msra.mxu0 %v824
    %826 = vmatprep.subr.mxu0 0.0
    %v827 = vand.u32 %v54, 4294901760
    %v828 = vsub.f32 %v54, %v827
    %v829 = vand.u32 %v828, 4294901760
    %830 = vmatpush1.msra.mxu0 %v829
    %831 = vmatprep.subr.mxu0 0.0
    %v832 = vand.u32 %v55, 4294901760
    %v833 = vsub.f32 %v55, %v832
    %v834 = vand.u32 %v833, 4294901760
    %835 = vmatpush1.msra.mxu0 %v834
    %836 = vmatprep.subr.mxu0 0.0
    %v837 = vand.u32 %v56, 4294901760
    %v838 = vsub.f32 %v56, %v837
    %v839 = vand.u32 %v838, 4294901760
    %840 = vmatpush1.msra.mxu0 %v839
    %841 = vmatprep.subr.mxu0 0.0
    %v842 = vand.u32 %v57, 4294901760
    %v843 = vsub.f32 %v57, %v842
    %v844 = vand.u32 %v843, 4294901760
    %845 = vmatpush1.msra.mxu0 %v844
    %846 = vmatprep.subr.mxu0 0.0
    %v847 = vand.u32 %v58, 4294901760
    %v848 = vsub.f32 %v58, %v847
    %v849 = vand.u32 %v848, 4294901760
    %850 = vmatpush1.msra.mxu0 %v849
    %851 = vmatprep.subr.mxu0 0.0
    %v852 = vand.u32 %v59, 4294901760
    %v853 = vsub.f32 %v59, %v852
    %v854 = vand.u32 %v853, 4294901760
    %855 = vmatpush1.msra.mxu0 %v854
    %856 = vmatprep.subr.mxu0 0.0
    %v857 = vand.u32 %v60, 4294901760
    %v858 = vsub.f32 %v60, %v857
    %v859 = vand.u32 %v858, 4294901760
    %860 = vmatpush1.msra.mxu0 %v859
    %861 = vmatprep.subr.mxu0 0.0
    %v862 = vand.u32 %v61, 4294901760
    %v863 = vsub.f32 %v61, %v862
    %v864 = vand.u32 %v863, 4294901760
    %865 = vmatpush1.msra.mxu0 %v864
    %v866 = vand.u32 %v103, 4294901760
    %867 = vmatprep.mubr.f32.mxu0 %v866
    %v868 = vand.u32 %v99, 4294901760
    %869 = vmatmul.mubr.f32.gmra.mrb[0].mxu0 %v868
    %v870 = vpop.f32.mrb[0].mxu0
    %v871 = vadd.f32 %v703, %v870
    %v872 = vpop.f32.mrb[0].mxu0
    %873 = vdwg.mxu0
    %874 = vmatprep.subr.mxu0 0.0
    %v875 = vand.u32 %v30, 4294901760
    %876 = vmatpush1.msra.mxu0 %v875
    %877 = vmatprep.subr.mxu0 0.0
    %v878 = vand.u32 %v31, 4294901760
    %879 = vmatpush1.msra.mxu0 %v878
    %880 = vmatprep.subr.mxu0 0.0
    %v881 = vand.u32 %v32, 4294901760
    %882 = vmatpush1.msra.mxu0 %v881
    %883 = vmatprep.subr.mxu0 0.0
    %v884 = vand.u32 %v33, 4294901760
    %885 = vmatpush1.msra.mxu0 %v884
    %886 = vmatprep.subr.mxu0 0.0
    %v887 = vand.u32 %v34, 4294901760
    %888 = vmatpush1.msra.mxu0 %v887
    %889 = vmatprep.subr.mxu0 0.0
    %v890 = vand.u32 %v35, 4294901760
    %891 = vmatpush1.msra.mxu0 %v890
    %892 = vmatprep.subr.mxu0 0.0
    %v893 = vand.u32 %v36, 4294901760
    %894 = vmatpush1.msra.mxu0 %v893
    %895 = vmatprep.subr.mxu0 0.0
    %v896 = vand.u32 %v37, 4294901760
    %897 = vmatpush1.msra.mxu0 %v896
    %898 = vmatprep.subr.mxu0 0.0
    %v899 = vand.u32 %v38, 4294901760
    %900 = vmatpush1.msra.mxu0 %v899
    %901 = vmatprep.subr.mxu0 0.0
    %v902 = vand.u32 %v39, 4294901760
    %903 = vmatpush1.msra.mxu0 %v902
    %904 = vmatprep.subr.mxu0 0.0
    %v905 = vand.u32 %v40, 4294901760
    %906 = vmatpush1.msra.mxu0 %v905
    %907 = vmatprep.subr.mxu0 0.0
    %v908 = vand.u32 %v41, 4294901760
    %909 = vmatpush1.msra.mxu0 %v908
    %910 = vmatprep.subr.mxu0 0.0
    %v911 = vand.u32 %v42, 4294901760
    %912 = vmatpush1.msra.mxu0 %v911
    %913 = vmatprep.subr.mxu0 0.0
    %v914 = vand.u32 %v43, 4294901760
    %915 = vmatpush1.msra.mxu0 %v914
    %916 = vmatprep.subr.mxu0 0.0
    %v917 = vand.u32 %v44, 4294901760
    %918 = vmatpush1.msra.mxu0 %v917
    %919 = vmatprep.subr.mxu0 0.0
    %v920 = vand.u32 %v45, 4294901760
    %921 = vmatpush1.msra.mxu0 %v920
    %922 = vmatprep.subr.mxu0 0.0
    %v923 = vand.u32 %v46, 4294901760
    %924 = vmatpush1.msra.mxu0 %v923
    %925 = vmatprep.subr.mxu0 0.0
    %v926 = vand.u32 %v47, 4294901760
    %927 = vmatpush1.msra.mxu0 %v926
    %928 = vmatprep.subr.mxu0 0.0
    %v929 = vand.u32 %v48, 4294901760
    %930 = vmatpush1.msra.mxu0 %v929
    %931 = vmatprep.subr.mxu0 0.0
    %v932 = vand.u32 %v49, 4294901760
    %933 = vmatpush1.msra.mxu0 %v932
    %934 = vmatprep.subr.mxu0 0.0
    %v935 = vand.u32 %v50, 4294901760
    %936 = vmatpush1.msra.mxu0 %v935
    %937 = vmatprep.subr.mxu0 0.0
    %v938 = vand.u32 %v51, 4294901760
    %939 = vmatpush1.msra.mxu0 %v938
    %940 = vmatprep.subr.mxu0 0.0
    %v941 = vand.u32 %v52, 4294901760
    %942 = vmatpush1.msra.mxu0 %v941
    %943 = vmatprep.subr.mxu0 0.0
    %v944 = vand.u32 %v53, 4294901760
    %945 = vmatpush1.msra.mxu0 %v944
    %946 = vmatprep.subr.mxu0 0.0
    %v947 = vand.u32 %v54, 4294901760
    %948 = vmatpush1.msra.mxu0 %v947
    %949 = vmatprep.subr.mxu0 0.0
    %v950 = vand.u32 %v55, 4294901760
    %951 = vmatpush1.msra.mxu0 %v950
    %952 = vmatprep.subr.mxu0 0.0
    %v953 = vand.u32 %v56, 4294901760
    %954 = vmatpush1.msra.mxu0 %v953
    %955 = vmatprep.subr.mxu0 0.0
    %v956 = vand.u32 %v57, 4294901760
    %957 = vmatpush1.msra.mxu0 %v956
    %958 = vmatprep.subr.mxu0 0.0
    %v959 = vand.u32 %v58, 4294901760
    %960 = vmatpush1.msra.mxu0 %v959
    %961 = vmatprep.subr.mxu0 0.0
    %v962 = vand.u32 %v59, 4294901760
    %963 = vmatpush1.msra.mxu0 %v962
    %964 = vmatprep.subr.mxu0 0.0
    %v965 = vand.u32 %v60, 4294901760
    %966 = vmatpush1.msra.mxu0 %v965
    %967 = vmatprep.subr.mxu0 0.0
    %v968 = vand.u32 %v61, 4294901760
    %969 = vmatpush1.msra.mxu0 %v968
    %v970 = vand.u32 %v103, 4294901760
    %971 = vmatprep.mubr.f32.mxu0 %v970
    %v972 = vand.u32 %v99, 4294901760
    %973 = vmatmul.mubr.f32.gmra.mrb[0].mxu0 %v972
    %v974 = vpop.f32.mrb[0].mxu0
    %v975 = vadd.f32 %v871, %v974
    %v976 = vpop.f32.mrb[0].mxu0
    %977 = vdwg.mxu0
    %978 = vmatprep.subr.mxu0 0.0
    %v979 = vand.u32 %v62, 4294901760
    %980 = vmatpush1.msra.mxu0 %v979
    %981 = vmatprep.subr.mxu0 0.0
    %v982 = vand.u32 %v63, 4294901760
    %983 = vmatpush1.msra.mxu0 %v982
    %984 = vmatprep.subr.mxu0 0.0
    %v985 = vand.u32 %v64, 4294901760
    %986 = vmatpush1.msra.mxu0 %v985
    %987 = vmatprep.subr.mxu0 0.0
    %v988 = vand.u32 %v65, 4294901760
    %989 = vmatpush1.msra.mxu0 %v988
    %990 = vmatprep.subr.mxu0 0.0
    %v991 = vand.u32 %v66, 4294901760
    %992 = vmatpush1.msra.mxu0 %v991
    %993 = vmatprep.subr.mxu0 0.0
    %v994 = vand.u32 %v67, 4294901760
    %995 = vmatpush1.msra.mxu0 %v994
    %996 = vmatprep.subr.mxu0 0.0
    %v997 = vand.u32 %v68, 4294901760
    %998 = vmatpush1.msra.mxu0 %v997
    %999 = vmatprep.subr.mxu0 0.0
    %v1000 = vand.u32 %v69, 4294901760
    %1001 = vmatpush1.msra.mxu0 %v1000
    %1002 = vmatprep.subr.mxu0 0.0
    %v1003 = vand.u32 %v70, 4294901760
    %1004 = vmatpush1.msra.mxu0 %v1003
    %1005 = vmatprep.subr.mxu0 0.0
    %v1006 = vand.u32 %v71, 4294901760
    %1007 = vmatpush1.msra.mxu0 %v1006
    %1008 = vmatprep.subr.mxu0 0.0
    %v1009 = vand.u32 %v72, 4294901760
    %1010 = vmatpush1.msra.mxu0 %v1009
    %1011 = vmatprep.subr.mxu0 0.0
    %v1012 = vand.u32 %v73, 4294901760
    %1013 = vmatpush1.msra.mxu0 %v1012
    %1014 = vmatprep.subr.mxu0 0.0
    %v1015 = vand.u32 %v74, 4294901760
    %1016 = vmatpush1.msra.mxu0 %v1015
    %1017 = vmatprep.subr.mxu0 0.0
    %v1018 = vand.u32 %v75, 4294901760
    %1019 = vmatpush1.msra.mxu0 %v1018
    %1020 = vmatprep.subr.mxu0 0.0
    %v1021 = vand.u32 %v76, 4294901760
    %1022 = vmatpush1.msra.mxu0 %v1021
    %1023 = vmatprep.subr.mxu0 0.0
    %v1024 = vand.u32 %v77, 4294901760
    %1025 = vmatpush1.msra.mxu0 %v1024
    %1026 = vmatprep.subr.mxu0 0.0
    %v1027 = vand.u32 %v78, 4294901760
    %1028 = vmatpush1.msra.mxu0 %v1027
    %1029 = vmatprep.subr.mxu0 0.0
    %v1030 = vand.u32 %v79, 4294901760
    %1031 = vmatpush1.msra.mxu0 %v1030
    %1032 = vmatprep.subr.mxu0 0.0
    %v1033 = vand.u32 %v80, 4294901760
    %1034 = vmatpush1.msra.mxu0 %v1033
    %1035 = vmatprep.subr.mxu0 0.0
    %v1036 = vand.u32 %v81, 4294901760
    %1037 = vmatpush1.msra.mxu0 %v1036
    %1038 = vmatprep.subr.mxu0 0.0
    %v1039 = vand.u32 %v82, 4294901760
    %1040 = vmatpush1.msra.mxu0 %v1039
    %1041 = vmatprep.subr.mxu0 0.0
    %v1042 = vand.u32 %v83, 4294901760
    %1043 = vmatpush1.msra.mxu0 %v1042
    %1044 = vmatprep.subr.mxu0 0.0
    %v1045 = vand.u32 %v84, 4294901760
    %1046 = vmatpush1.msra.mxu0 %v1045
    %1047 = vmatprep.subr.mxu0 0.0
    %v1048 = vand.u32 %v85, 4294901760
    %1049 = vmatpush1.msra.mxu0 %v1048
    %1050 = vmatprep.subr.mxu0 0.0
    %v1051 = vand.u32 %v86, 4294901760
    %1052 = vmatpush1.msra.mxu0 %v1051
    %1053 = vmatprep.subr.mxu0 0.0
    %v1054 = vand.u32 %v87, 4294901760
    %1055 = vmatpush1.msra.mxu0 %v1054
    %1056 = vmatprep.subr.mxu0 0.0
    %v1057 = vand.u32 %v88, 4294901760
    %1058 = vmatpush1.msra.mxu0 %v1057
    %1059 = vmatprep.subr.mxu0 0.0
    %v1060 = vand.u32 %v89, 4294901760
    %1061 = vmatpush1.msra.mxu0 %v1060
    %1062 = vmatprep.subr.mxu0 0.0
    %v1063 = vand.u32 %v90, 4294901760
    %1064 = vmatpush1.msra.mxu0 %v1063
    %1065 = vmatprep.subr.mxu0 0.0
    %v1066 = vand.u32 %v91, 4294901760
    %1067 = vmatpush1.msra.mxu0 %v1066
    %1068 = vmatprep.subr.mxu0 0.0
    %v1069 = vand.u32 %v92, 4294901760
    %1070 = vmatpush1.msra.mxu0 %v1069
    %1071 = vmatprep.subr.mxu0 0.0
    %v1072 = vand.u32 %v93, 4294901760
    %1073 = vmatpush1.msra.mxu0 %v1072
    %v1074 = vand.u32 %v111, 4294901760
    %v1075 = vsub.f32 %v111, %v1074
    %v1076 = vand.u32 %v1075, 4294901760
    %v1077 = vsub.f32 %v1075, %v1076
    %v1078 = vand.u32 %v1077, 4294901760
    %1079 = vmatprep.mubr.f32.mxu0 %v1078
    %v1080 = vand.u32 %v107, 4294901760
    %v1081 = vsub.f32 %v107, %v1080
    %v1082 = vand.u32 %v1081, 4294901760
    %v1083 = vsub.f32 %v1081, %v1082
    %v1084 = vand.u32 %v1083, 4294901760
    %1085 = vmatmul.mubr.f32.gmra.mrb[0].mxu0 %v1084
    %v1086 = vpop.f32.mrb[0].mxu0
    %v1087 = vadd.f32 %v975, %v1086
    %v1088 = vpop.f32.mrb[0].mxu0
    %1089 = vdwg.mxu0
    %1090 = vmatprep.subr.mxu0 0.0
    %v1091 = vand.u32 %v62, 4294901760
    %v1092 = vsub.f32 %v62, %v1091
    %v1093 = vand.u32 %v1092, 4294901760
    %v1094 = vsub.f32 %v1092, %v1093
    %v1095 = vand.u32 %v1094, 4294901760
    %1096 = vmatpush1.msra.mxu0 %v1095
    %1097 = vmatprep.subr.mxu0 0.0
    %v1098 = vand.u32 %v63, 4294901760
    %v1099 = vsub.f32 %v63, %v1098
    %v1100 = vand.u32 %v1099, 4294901760
    %v1101 = vsub.f32 %v1099, %v1100
    %v1102 = vand.u32 %v1101, 4294901760
    %1103 = vmatpush1.msra.mxu0 %v1102
    %1104 = vmatprep.subr.mxu0 0.0
    %v1105 = vand.u32 %v64, 4294901760
    %v1106 = vsub.f32 %v64, %v1105
    %v1107 = vand.u32 %v1106, 4294901760
    %v1108 = vsub.f32 %v1106, %v1107
    %v1109 = vand.u32 %v1108, 4294901760
    %1110 = vmatpush1.msra.mxu0 %v1109
    %1111 = vmatprep.subr.mxu0 0.0
    %v1112 = vand.u32 %v65, 4294901760
    %v1113 = vsub.f32 %v65, %v1112
    %v1114 = vand.u32 %v1113, 4294901760
    %v1115 = vsub.f32 %v1113, %v1114
    %v1116 = vand.u32 %v1115, 4294901760
    %1117 = vmatpush1.msra.mxu0 %v1116
    %1118 = vmatprep.subr.mxu0 0.0
    %v1119 = vand.u32 %v66, 4294901760
    %v1120 = vsub.f32 %v66, %v1119
    %v1121 = vand.u32 %v1120, 4294901760
    %v1122 = vsub.f32 %v1120, %v1121
    %v1123 = vand.u32 %v1122, 4294901760
    %1124 = vmatpush1.msra.mxu0 %v1123
    %1125 = vmatprep.subr.mxu0 0.0
    %v1126 = vand.u32 %v67, 4294901760
    %v1127 = vsub.f32 %v67, %v1126
    %v1128 = vand.u32 %v1127, 4294901760
    %v1129 = vsub.f32 %v1127, %v1128
    %v1130 = vand.u32 %v1129, 4294901760
    %1131 = vmatpush1.msra.mxu0 %v1130
    %1132 = vmatprep.subr.mxu0 0.0
    %v1133 = vand.u32 %v68, 4294901760
    %v1134 = vsub.f32 %v68, %v1133
    %v1135 = vand.u32 %v1134, 4294901760
    %v1136 = vsub.f32 %v1134, %v1135
    %v1137 = vand.u32 %v1136, 4294901760
    %1138 = vmatpush1.msra.mxu0 %v1137
    %1139 = vmatprep.subr.mxu0 0.0
    %v1140 = vand.u32 %v69, 4294901760
    %v1141 = vsub.f32 %v69, %v1140
    %v1142 = vand.u32 %v1141, 4294901760
    %v1143 = vsub.f32 %v1141, %v1142
    %v1144 = vand.u32 %v1143, 4294901760
    %1145 = vmatpush1.msra.mxu0 %v1144
    %1146 = vmatprep.subr.mxu0 0.0
    %v1147 = vand.u32 %v70, 4294901760
    %v1148 = vsub.f32 %v70, %v1147
    %v1149 = vand.u32 %v1148, 4294901760
    %v1150 = vsub.f32 %v1148, %v1149
    %v1151 = vand.u32 %v1150, 4294901760
    %1152 = vmatpush1.msra.mxu0 %v1151
    %1153 = vmatprep.subr.mxu0 0.0
    %v1154 = vand.u32 %v71, 4294901760
    %v1155 = vsub.f32 %v71, %v1154
    %v1156 = vand.u32 %v1155, 4294901760
    %v1157 = vsub.f32 %v1155, %v1156
    %v1158 = vand.u32 %v1157, 4294901760
    %1159 = vmatpush1.msra.mxu0 %v1158
    %1160 = vmatprep.subr.mxu0 0.0
    %v1161 = vand.u32 %v72, 4294901760
    %v1162 = vsub.f32 %v72, %v1161
    %v1163 = vand.u32 %v1162, 4294901760
    %v1164 = vsub.f32 %v1162, %v1163
    %v1165 = vand.u32 %v1164, 4294901760
    %1166 = vmatpush1.msra.mxu0 %v1165
    %1167 = vmatprep.subr.mxu0 0.0
    %v1168 = vand.u32 %v73, 4294901760
    %v1169 = vsub.f32 %v73, %v1168
    %v1170 = vand.u32 %v1169, 4294901760
    %v1171 = vsub.f32 %v1169, %v1170
    %v1172 = vand.u32 %v1171, 4294901760
    %1173 = vmatpush1.msra.mxu0 %v1172
    %1174 = vmatprep.subr.mxu0 0.0
    %v1175 = vand.u32 %v74, 4294901760
    %v1176 = vsub.f32 %v74, %v1175
    %v1177 = vand.u32 %v1176, 4294901760
    %v1178 = vsub.f32 %v1176, %v1177
    %v1179 = vand.u32 %v1178, 4294901760
    %1180 = vmatpush1.msra.mxu0 %v1179
    %1181 = vmatprep.subr.mxu0 0.0
    %v1182 = vand.u32 %v75, 4294901760
    %v1183 = vsub.f32 %v75, %v1182
    %v1184 = vand.u32 %v1183, 4294901760
    %v1185 = vsub.f32 %v1183, %v1184
    %v1186 = vand.u32 %v1185, 4294901760
    %1187 = vmatpush1.msra.mxu0 %v1186
    %1188 = vmatprep.subr.mxu0 0.0
    %v1189 = vand.u32 %v76, 4294901760
    %v1190 = vsub.f32 %v76, %v1189
    %v1191 = vand.u32 %v1190, 4294901760
    %v1192 = vsub.f32 %v1190, %v1191
    %v1193 = vand.u32 %v1192, 4294901760
    %1194 = vmatpush1.msra.mxu0 %v1193
    %1195 = vmatprep.subr.mxu0 0.0
    %v1196 = vand.u32 %v77, 4294901760
    %v1197 = vsub.f32 %v77, %v1196
    %v1198 = vand.u32 %v1197, 4294901760
    %v1199 = vsub.f32 %v1197, %v1198
    %v1200 = vand.u32 %v1199, 4294901760
    %1201 = vmatpush1.msra.mxu0 %v1200
    %1202 = vmatprep.subr.mxu0 0.0
    %v1203 = vand.u32 %v78, 4294901760
    %v1204 = vsub.f32 %v78, %v1203
    %v1205 = vand.u32 %v1204, 4294901760
    %v1206 = vsub.f32 %v1204, %v1205
    %v1207 = vand.u32 %v1206, 4294901760
    %1208 = vmatpush1.msra.mxu0 %v1207
    %1209 = vmatprep.subr.mxu0 0.0
    %v1210 = vand.u32 %v79, 4294901760
    %v1211 = vsub.f32 %v79, %v1210
    %v1212 = vand.u32 %v1211, 4294901760
    %v1213 = vsub.f32 %v1211, %v1212
    %v1214 = vand.u32 %v1213, 4294901760
    %1215 = vmatpush1.msra.mxu0 %v1214
    %1216 = vmatprep.subr.mxu0 0.0
    %v1217 = vand.u32 %v80, 4294901760
    %v1218 = vsub.f32 %v80, %v1217
    %v1219 = vand.u32 %v1218, 4294901760
    %v1220 = vsub.f32 %v1218, %v1219
    %v1221 = vand.u32 %v1220, 4294901760
    %1222 = vmatpush1.msra.mxu0 %v1221
    %1223 = vmatprep.subr.mxu0 0.0
    %v1224 = vand.u32 %v81, 4294901760
    %v1225 = vsub.f32 %v81, %v1224
    %v1226 = vand.u32 %v1225, 4294901760
    %v1227 = vsub.f32 %v1225, %v1226
    %v1228 = vand.u32 %v1227, 4294901760
    %1229 = vmatpush1.msra.mxu0 %v1228
    %1230 = vmatprep.subr.mxu0 0.0
    %v1231 = vand.u32 %v82, 4294901760
    %v1232 = vsub.f32 %v82, %v1231
    %v1233 = vand.u32 %v1232, 4294901760
    %v1234 = vsub.f32 %v1232, %v1233
    %v1235 = vand.u32 %v1234, 4294901760
    %1236 = vmatpush1.msra.mxu0 %v1235
    %1237 = vmatprep.subr.mxu0 0.0
    %v1238 = vand.u32 %v83, 4294901760
    %v1239 = vsub.f32 %v83, %v1238
    %v1240 = vand.u32 %v1239, 4294901760
    %v1241 = vsub.f32 %v1239, %v1240
    %v1242 = vand.u32 %v1241, 4294901760
    %1243 = vmatpush1.msra.mxu0 %v1242
    %1244 = vmatprep.subr.mxu0 0.0
    %v1245 = vand.u32 %v84, 4294901760
    %v1246 = vsub.f32 %v84, %v1245
    %v1247 = vand.u32 %v1246, 4294901760
    %v1248 = vsub.f32 %v1246, %v1247
    %v1249 = vand.u32 %v1248, 4294901760
    %1250 = vmatpush1.msra.mxu0 %v1249
    %1251 = vmatprep.subr.mxu0 0.0
    %v1252 = vand.u32 %v85, 4294901760
    %v1253 = vsub.f32 %v85, %v1252
    %v1254 = vand.u32 %v1253, 4294901760
    %v1255 = vsub.f32 %v1253, %v1254
    %v1256 = vand.u32 %v1255, 4294901760
    %1257 = vmatpush1.msra.mxu0 %v1256
    %1258 = vmatprep.subr.mxu0 0.0
    %v1259 = vand.u32 %v86, 4294901760
    %v1260 = vsub.f32 %v86, %v1259
    %v1261 = vand.u32 %v1260, 4294901760
    %v1262 = vsub.f32 %v1260, %v1261
    %v1263 = vand.u32 %v1262, 4294901760
    %1264 = vmatpush1.msra.mxu0 %v1263
    %1265 = vmatprep.subr.mxu0 0.0
    %v1266 = vand.u32 %v87, 4294901760
    %v1267 = vsub.f32 %v87, %v1266
    %v1268 = vand.u32 %v1267, 4294901760
    %v1269 = vsub.f32 %v1267, %v1268
    %v1270 = vand.u32 %v1269, 4294901760
    %1271 = vmatpush1.msra.mxu0 %v1270
    %1272 = vmatprep.subr.mxu0 0.0
    %v1273 = vand.u32 %v88, 4294901760
    %v1274 = vsub.f32 %v88, %v1273
    %v1275 = vand.u32 %v1274, 4294901760
    %v1276 = vsub.f32 %v1274, %v1275
    %v1277 = vand.u32 %v1276, 4294901760
    %1278 = vmatpush1.msra.mxu0 %v1277
    %1279 = vmatprep.subr.mxu0 0.0
    %v1280 = vand.u32 %v89, 4294901760
    %v1281 = vsub.f32 %v89, %v1280
    %v1282 = vand.u32 %v1281, 4294901760
    %v1283 = vsub.f32 %v1281, %v1282
    %v1284 = vand.u32 %v1283, 4294901760
    %1285 = vmatpush1.msra.mxu0 %v1284
    %1286 = vmatprep.subr.mxu0 0.0
    %v1287 = vand.u32 %v90, 4294901760
    %v1288 = vsub.f32 %v90, %v1287
    %v1289 = vand.u32 %v1288, 4294901760
    %v1290 = vsub.f32 %v1288, %v1289
    %v1291 = vand.u32 %v1290, 4294901760
    %1292 = vmatpush1.msra.mxu0 %v1291
    %1293 = vmatprep.subr.mxu0 0.0
    %v1294 = vand.u32 %v91, 4294901760
    %v1295 = vsub.f32 %v91, %v1294
    %v1296 = vand.u32 %v1295, 4294901760
    %v1297 = vsub.f32 %v1295, %v1296
    %v1298 = vand.u32 %v1297, 4294901760
    %1299 = vmatpush1.msra.mxu0 %v1298
    %1300 = vmatprep.subr.mxu0 0.0
    %v1301 = vand.u32 %v92, 4294901760
    %v1302 = vsub.f32 %v92, %v1301
    %v1303 = vand.u32 %v1302, 4294901760
    %v1304 = vsub.f32 %v1302, %v1303
    %v1305 = vand.u32 %v1304, 4294901760
    %1306 = vmatpush1.msra.mxu0 %v1305
    %1307 = vmatprep.subr.mxu0 0.0
    %v1308 = vand.u32 %v93, 4294901760
    %v1309 = vsub.f32 %v93, %v1308
    %v1310 = vand.u32 %v1309, 4294901760
    %v1311 = vsub.f32 %v1309, %v1310
    %v1312 = vand.u32 %v1311, 4294901760
    %1313 = vmatpush1.msra.mxu0 %v1312
    %v1314 = vand.u32 %v111, 4294901760
    %1315 = vmatprep.mubr.f32.mxu0 %v1314
    %v1316 = vand.u32 %v107, 4294901760
    %1317 = vmatmul.mubr.f32.gmra.mrb[0].mxu0 %v1316
    %v1318 = vpop.f32.mrb[0].mxu0
    %v1319 = vadd.f32 %v1087, %v1318
    %v1320 = vpop.f32.mrb[0].mxu0
    %1321 = vdwg.mxu0
    %1322 = vmatprep.subr.mxu0 0.0
    %v1323 = vand.u32 %v62, 4294901760
    %v1324 = vsub.f32 %v62, %v1323
    %1325 = vmatpush1.msra.mxu0 %v1324
    %1326 = vmatprep.subr.mxu0 0.0
    %v1327 = vand.u32 %v63, 4294901760
    %v1328 = vsub.f32 %v63, %v1327
    %1329 = vmatpush1.msra.mxu0 %v1328
    %1330 = vmatprep.subr.mxu0 0.0
    %v1331 = vand.u32 %v64, 4294901760
    %v1332 = vsub.f32 %v64, %v1331
    %1333 = vmatpush1.msra.mxu0 %v1332
    %1334 = vmatprep.subr.mxu0 0.0
    %v1335 = vand.u32 %v65, 4294901760
    %v1336 = vsub.f32 %v65, %v1335
    %1337 = vmatpush1.msra.mxu0 %v1336
    %1338 = vmatprep.subr.mxu0 0.0
    %v1339 = vand.u32 %v66, 4294901760
    %v1340 = vsub.f32 %v66, %v1339
    %1341 = vmatpush1.msra.mxu0 %v1340
    %1342 = vmatprep.subr.mxu0 0.0
    %v1343 = vand.u32 %v67, 4294901760
    %v1344 = vsub.f32 %v67, %v1343
    %1345 = vmatpush1.msra.mxu0 %v1344
    %1346 = vmatprep.subr.mxu0 0.0
    %v1347 = vand.u32 %v68, 4294901760
    %v1348 = vsub.f32 %v68, %v1347
    %1349 = vmatpush1.msra.mxu0 %v1348
    %1350 = vmatprep.subr.mxu0 0.0
    %v1351 = vand.u32 %v69, 4294901760
    %v1352 = vsub.f32 %v69, %v1351
    %1353 = vmatpush1.msra.mxu0 %v1352
    %1354 = vmatprep.subr.mxu0 0.0
    %v1355 = vand.u32 %v70, 4294901760
    %v1356 = vsub.f32 %v70, %v1355
    %1357 = vmatpush1.msra.mxu0 %v1356
    %1358 = vmatprep.subr.mxu0 0.0
    %v1359 = vand.u32 %v71, 4294901760
    %v1360 = vsub.f32 %v71, %v1359
    %1361 = vmatpush1.msra.mxu0 %v1360
    %1362 = vmatprep.subr.mxu0 0.0
    %v1363 = vand.u32 %v72, 4294901760
    %v1364 = vsub.f32 %v72, %v1363
    %1365 = vmatpush1.msra.mxu0 %v1364
    %1366 = vmatprep.subr.mxu0 0.0
    %v1367 = vand.u32 %v73, 4294901760
    %v1368 = vsub.f32 %v73, %v1367
    %1369 = vmatpush1.msra.mxu0 %v1368
    %1370 = vmatprep.subr.mxu0 0.0
    %v1371 = vand.u32 %v74, 4294901760
    %v1372 = vsub.f32 %v74, %v1371
    %1373 = vmatpush1.msra.mxu0 %v1372
    %1374 = vmatprep.subr.mxu0 0.0
    %v1375 = vand.u32 %v75, 4294901760
    %v1376 = vsub.f32 %v75, %v1375
    %1377 = vmatpush1.msra.mxu0 %v1376
    %1378 = vmatprep.subr.mxu0 0.0
    %v1379 = vand.u32 %v76, 4294901760
    %v1380 = vsub.f32 %v76, %v1379
    %1381 = vmatpush1.msra.mxu0 %v1380
    %1382 = vmatprep.subr.mxu0 0.0
    %v1383 = vand.u32 %v77, 4294901760
    %v1384 = vsub.f32 %v77, %v1383
    %1385 = vmatpush1.msra.mxu0 %v1384
    %1386 = vmatprep.subr.mxu0 0.0
    %v1387 = vand.u32 %v78, 4294901760
    %v1388 = vsub.f32 %v78, %v1387
    %1389 = vmatpush1.msra.mxu0 %v1388
    %1390 = vmatprep.subr.mxu0 0.0
    %v1391 = vand.u32 %v79, 4294901760
    %v1392 = vsub.f32 %v79, %v1391
    %1393 = vmatpush1.msra.mxu0 %v1392
    %1394 = vmatprep.subr.mxu0 0.0
    %v1395 = vand.u32 %v80, 4294901760
    %v1396 = vsub.f32 %v80, %v1395
    %1397 = vmatpush1.msra.mxu0 %v1396
    %1398 = vmatprep.subr.mxu0 0.0
    %v1399 = vand.u32 %v81, 4294901760
    %v1400 = vsub.f32 %v81, %v1399
    %1401 = vmatpush1.msra.mxu0 %v1400
    %1402 = vmatprep.subr.mxu0 0.0
    %v1403 = vand.u32 %v82, 4294901760
    %v1404 = vsub.f32 %v82, %v1403
    %1405 = vmatpush1.msra.mxu0 %v1404
    %1406 = vmatprep.subr.mxu0 0.0
    %v1407 = vand.u32 %v83, 4294901760
    %v1408 = vsub.f32 %v83, %v1407
    %1409 = vmatpush1.msra.mxu0 %v1408
    %1410 = vmatprep.subr.mxu0 0.0
    %v1411 = vand.u32 %v84, 4294901760
    %v1412 = vsub.f32 %v84, %v1411
    %1413 = vmatpush1.msra.mxu0 %v1412
    %1414 = vmatprep.subr.mxu0 0.0
    %v1415 = vand.u32 %v85, 4294901760
    %v1416 = vsub.f32 %v85, %v1415
    %1417 = vmatpush1.msra.mxu0 %v1416
    %1418 = vmatprep.subr.mxu0 0.0
    %v1419 = vand.u32 %v86, 4294901760
    %v1420 = vsub.f32 %v86, %v1419
    %1421 = vmatpush1.msra.mxu0 %v1420
    %1422 = vmatprep.subr.mxu0 0.0
    %v1423 = vand.u32 %v87, 4294901760
    %v1424 = vsub.f32 %v87, %v1423
    %1425 = vmatpush1.msra.mxu0 %v1424
    %1426 = vmatprep.subr.mxu0 0.0
    %v1427 = vand.u32 %v88, 4294901760
    %v1428 = vsub.f32 %v88, %v1427
    %1429 = vmatpush1.msra.mxu0 %v1428
    %1430 = vmatprep.subr.mxu0 0.0
    %v1431 = vand.u32 %v89, 4294901760
    %v1432 = vsub.f32 %v89, %v1431
    %1433 = vmatpush1.msra.mxu0 %v1432
    %1434 = vmatprep.subr.mxu0 0.0
    %v1435 = vand.u32 %v90, 4294901760
    %v1436 = vsub.f32 %v90, %v1435
    %1437 = vmatpush1.msra.mxu0 %v1436
    %1438 = vmatprep.subr.mxu0 0.0
    %v1439 = vand.u32 %v91, 4294901760
    %v1440 = vsub.f32 %v91, %v1439
    %1441 = vmatpush1.msra.mxu0 %v1440
    %1442 = vmatprep.subr.mxu0 0.0
    %v1443 = vand.u32 %v92, 4294901760
    %v1444 = vsub.f32 %v92, %v1443
    %1445 = vmatpush1.msra.mxu0 %v1444
    %1446 = vmatprep.subr.mxu0 0.0
    %v1447 = vand.u32 %v93, 4294901760
    %v1448 = vsub.f32 %v93, %v1447
    %1449 = vmatpush1.msra.mxu0 %v1448
    %v1450 = vand.u32 %v111, 4294901760
    %v1451 = vsub.f32 %v111, %v1450
    %1452 = vmatprep.mubr.f32.mxu0 %v1451
    %v1453 = vand.u32 %v107, 4294901760
    %v1454 = vsub.f32 %v107, %v1453
    %1455 = vmatmul.mubr.f32.gmra.mrb[0].mxu0 %v1454
    %v1456 = vpop.f32.mrb[0].mxu0
    %v1457 = vadd.f32 %v1319, %v1456
    %v1458 = vpop.f32.mrb[0].mxu0
    %1459 = vdwg.mxu0
    %1460 = vmatprep.subr.mxu0 0.0
    %v1461 = vand.u32 %v62, 4294901760
    %1462 = vmatpush1.msra.mxu0 %v1461
    %1463 = vmatprep.subr.mxu0 0.0
    %v1464 = vand.u32 %v63, 4294901760
    %1465 = vmatpush1.msra.mxu0 %v1464
    %1466 = vmatprep.subr.mxu0 0.0
    %v1467 = vand.u32 %v64, 4294901760
    %1468 = vmatpush1.msra.mxu0 %v1467
    %1469 = vmatprep.subr.mxu0 0.0
    %v1470 = vand.u32 %v65, 4294901760
    %1471 = vmatpush1.msra.mxu0 %v1470
    %1472 = vmatprep.subr.mxu0 0.0
    %v1473 = vand.u32 %v66, 4294901760
    %1474 = vmatpush1.msra.mxu0 %v1473
    %1475 = vmatprep.subr.mxu0 0.0
    %v1476 = vand.u32 %v67, 4294901760
    %1477 = vmatpush1.msra.mxu0 %v1476
    %1478 = vmatprep.subr.mxu0 0.0
    %v1479 = vand.u32 %v68, 4294901760
    %1480 = vmatpush1.msra.mxu0 %v1479
    %1481 = vmatprep.subr.mxu0 0.0
    %v1482 = vand.u32 %v69, 4294901760
    %1483 = vmatpush1.msra.mxu0 %v1482
    %1484 = vmatprep.subr.mxu0 0.0
    %v1485 = vand.u32 %v70, 4294901760
    %1486 = vmatpush1.msra.mxu0 %v1485
    %1487 = vmatprep.subr.mxu0 0.0
    %v1488 = vand.u32 %v71, 4294901760
    %1489 = vmatpush1.msra.mxu0 %v1488
    %1490 = vmatprep.subr.mxu0 0.0
    %v1491 = vand.u32 %v72, 4294901760
    %1492 = vmatpush1.msra.mxu0 %v1491
    %1493 = vmatprep.subr.mxu0 0.0
    %v1494 = vand.u32 %v73, 4294901760
    %1495 = vmatpush1.msra.mxu0 %v1494
    %1496 = vmatprep.subr.mxu0 0.0
    %v1497 = vand.u32 %v74, 4294901760
    %1498 = vmatpush1.msra.mxu0 %v1497
    %1499 = vmatprep.subr.mxu0 0.0
    %v1500 = vand.u32 %v75, 4294901760
    %1501 = vmatpush1.msra.mxu0 %v1500
    %1502 = vmatprep.subr.mxu0 0.0
    %v1503 = vand.u32 %v76, 4294901760
    %1504 = vmatpush1.msra.mxu0 %v1503
    %1505 = vmatprep.subr.mxu0 0.0
    %v1506 = vand.u32 %v77, 4294901760
    %1507 = vmatpush1.msra.mxu0 %v1506
    %1508 = vmatprep.subr.mxu0 0.0
    %v1509 = vand.u32 %v78, 4294901760
    %1510 = vmatpush1.msra.mxu0 %v1509
    %1511 = vmatprep.subr.mxu0 0.0
    %v1512 = vand.u32 %v79, 4294901760
    %1513 = vmatpush1.msra.mxu0 %v1512
    %1514 = vmatprep.subr.mxu0 0.0
    %v1515 = vand.u32 %v80, 4294901760
    %1516 = vmatpush1.msra.mxu0 %v1515
    %1517 = vmatprep.subr.mxu0 0.0
    %v1518 = vand.u32 %v81, 4294901760
    %1519 = vmatpush1.msra.mxu0 %v1518
    %1520 = vmatprep.subr.mxu0 0.0
    %v1521 = vand.u32 %v82, 4294901760
    %1522 = vmatpush1.msra.mxu0 %v1521
    %1523 = vmatprep.subr.mxu0 0.0
    %v1524 = vand.u32 %v83, 4294901760
    %1525 = vmatpush1.msra.mxu0 %v1524
    %1526 = vmatprep.subr.mxu0 0.0
    %v1527 = vand.u32 %v84, 4294901760
    %1528 = vmatpush1.msra.mxu0 %v1527
    %1529 = vmatprep.subr.mxu0 0.0
    %v1530 = vand.u32 %v85, 4294901760
    %1531 = vmatpush1.msra.mxu0 %v1530
    %1532 = vmatprep.subr.mxu0 0.0
    %v1533 = vand.u32 %v86, 4294901760
    %1534 = vmatpush1.msra.mxu0 %v1533
    %1535 = vmatprep.subr.mxu0 0.0
    %v1536 = vand.u32 %v87, 4294901760
    %1537 = vmatpush1.msra.mxu0 %v1536
    %1538 = vmatprep.subr.mxu0 0.0
    %v1539 = vand.u32 %v88, 4294901760
    %1540 = vmatpush1.msra.mxu0 %v1539
    %1541 = vmatprep.subr.mxu0 0.0
    %v1542 = vand.u32 %v89, 4294901760
    %1543 = vmatpush1.msra.mxu0 %v1542
    %1544 = vmatprep.subr.mxu0 0.0
    %v1545 = vand.u32 %v90, 4294901760
    %1546 = vmatpush1.msra.mxu0 %v1545
    %1547 = vmatprep.subr.mxu0 0.0
    %v1548 = vand.u32 %v91, 4294901760
    %1549 = vmatpush1.msra.mxu0 %v1548
    %1550 = vmatprep.subr.mxu0 0.0
    %v1551 = vand.u32 %v92, 4294901760
    %1552 = vmatpush1.msra.mxu0 %v1551
    %1553 = vmatprep.subr.mxu0 0.0
    %v1554 = vand.u32 %v93, 4294901760
    %1555 = vmatpush1.msra.mxu0 %v1554
    %v1556 = vand.u32 %v111, 4294901760
    %v1557 = vsub.f32 %v111, %v1556
    %v1558 = vand.u32 %v1557, 4294901760
    %1559 = vmatprep.mubr.f32.mxu0 %v1558
    %v1560 = vand.u32 %v107, 4294901760
    %v1561 = vsub.f32 %v107, %v1560
    %v1562 = vand.u32 %v1561, 4294901760
    %1563 = vmatmul.mubr.f32.gmra.mrb[0].mxu0 %v1562
    %v1564 = vpop.f32.mrb[0].mxu0
    %v1565 = vadd.f32 %v1457, %v1564
    %v1566 = vpop.f32.mrb[0].mxu0
    %1567 = vdwg.mxu0
    %1568 = vmatprep.subr.mxu0 0.0
    %v1569 = vand.u32 %v62, 4294901760
    %v1570 = vsub.f32 %v62, %v1569
    %v1571 = vand.u32 %v1570, 4294901760
    %1572 = vmatpush1.msra.mxu0 %v1571
    %1573 = vmatprep.subr.mxu0 0.0
    %v1574 = vand.u32 %v63, 4294901760
    %v1575 = vsub.f32 %v63, %v1574
    %v1576 = vand.u32 %v1575, 4294901760
    %1577 = vmatpush1.msra.mxu0 %v1576
    %1578 = vmatprep.subr.mxu0 0.0
    %v1579 = vand.u32 %v64, 4294901760
    %v1580 = vsub.f32 %v64, %v1579
    %v1581 = vand.u32 %v1580, 4294901760
    %1582 = vmatpush1.msra.mxu0 %v1581
    %1583 = vmatprep.subr.mxu0 0.0
    %v1584 = vand.u32 %v65, 4294901760
    %v1585 = vsub.f32 %v65, %v1584
    %v1586 = vand.u32 %v1585, 4294901760
    %1587 = vmatpush1.msra.mxu0 %v1586
    %1588 = vmatprep.subr.mxu0 0.0
    %v1589 = vand.u32 %v66, 4294901760
    %v1590 = vsub.f32 %v66, %v1589
    %v1591 = vand.u32 %v1590, 4294901760
    %1592 = vmatpush1.msra.mxu0 %v1591
    %1593 = vmatprep.subr.mxu0 0.0
    %v1594 = vand.u32 %v67, 4294901760
    %v1595 = vsub.f32 %v67, %v1594
    %v1596 = vand.u32 %v1595, 4294901760
    %1597 = vmatpush1.msra.mxu0 %v1596
    %1598 = vmatprep.subr.mxu0 0.0
    %v1599 = vand.u32 %v68, 4294901760
    %v1600 = vsub.f32 %v68, %v1599
    %v1601 = vand.u32 %v1600, 4294901760
    %1602 = vmatpush1.msra.mxu0 %v1601
    %1603 = vmatprep.subr.mxu0 0.0
    %v1604 = vand.u32 %v69, 4294901760
    %v1605 = vsub.f32 %v69, %v1604
    %v1606 = vand.u32 %v1605, 4294901760
    %1607 = vmatpush1.msra.mxu0 %v1606
    %1608 = vmatprep.subr.mxu0 0.0
    %v1609 = vand.u32 %v70, 4294901760
    %v1610 = vsub.f32 %v70, %v1609
    %v1611 = vand.u32 %v1610, 4294901760
    %1612 = vmatpush1.msra.mxu0 %v1611
    %1613 = vmatprep.subr.mxu0 0.0
    %v1614 = vand.u32 %v71, 4294901760
    %v1615 = vsub.f32 %v71, %v1614
    %v1616 = vand.u32 %v1615, 4294901760
    %1617 = vmatpush1.msra.mxu0 %v1616
    %1618 = vmatprep.subr.mxu0 0.0
    %v1619 = vand.u32 %v72, 4294901760
    %v1620 = vsub.f32 %v72, %v1619
    %v1621 = vand.u32 %v1620, 4294901760
    %1622 = vmatpush1.msra.mxu0 %v1621
    %1623 = vmatprep.subr.mxu0 0.0
    %v1624 = vand.u32 %v73, 4294901760
    %v1625 = vsub.f32 %v73, %v1624
    %v1626 = vand.u32 %v1625, 4294901760
    %1627 = vmatpush1.msra.mxu0 %v1626
    %1628 = vmatprep.subr.mxu0 0.0
    %v1629 = vand.u32 %v74, 4294901760
    %v1630 = vsub.f32 %v74, %v1629
    %v1631 = vand.u32 %v1630, 4294901760
    %1632 = vmatpush1.msra.mxu0 %v1631
    %1633 = vmatprep.subr.mxu0 0.0
    %v1634 = vand.u32 %v75, 4294901760
    %v1635 = vsub.f32 %v75, %v1634
    %v1636 = vand.u32 %v1635, 4294901760
    %1637 = vmatpush1.msra.mxu0 %v1636
    %1638 = vmatprep.subr.mxu0 0.0
    %v1639 = vand.u32 %v76, 4294901760
    %v1640 = vsub.f32 %v76, %v1639
    %v1641 = vand.u32 %v1640, 4294901760
    %1642 = vmatpush1.msra.mxu0 %v1641
    %1643 = vmatprep.subr.mxu0 0.0
    %v1644 = vand.u32 %v77, 4294901760
    %v1645 = vsub.f32 %v77, %v1644
    %v1646 = vand.u32 %v1645, 4294901760
    %1647 = vmatpush1.msra.mxu0 %v1646
    %1648 = vmatprep.subr.mxu0 0.0
    %v1649 = vand.u32 %v78, 4294901760
    %v1650 = vsub.f32 %v78, %v1649
    %v1651 = vand.u32 %v1650, 4294901760
    %1652 = vmatpush1.msra.mxu0 %v1651
    %1653 = vmatprep.subr.mxu0 0.0
    %v1654 = vand.u32 %v79, 4294901760
    %v1655 = vsub.f32 %v79, %v1654
    %v1656 = vand.u32 %v1655, 4294901760
    %1657 = vmatpush1.msra.mxu0 %v1656
    %1658 = vmatprep.subr.mxu0 0.0
    %v1659 = vand.u32 %v80, 4294901760
    %v1660 = vsub.f32 %v80, %v1659
    %v1661 = vand.u32 %v1660, 4294901760
    %1662 = vmatpush1.msra.mxu0 %v1661
    %1663 = vmatprep.subr.mxu0 0.0
    %v1664 = vand.u32 %v81, 4294901760
    %v1665 = vsub.f32 %v81, %v1664
    %v1666 = vand.u32 %v1665, 4294901760
    %1667 = vmatpush1.msra.mxu0 %v1666
    %1668 = vmatprep.subr.mxu0 0.0
    %v1669 = vand.u32 %v82, 4294901760
    %v1670 = vsub.f32 %v82, %v1669
    %v1671 = vand.u32 %v1670, 4294901760
    %1672 = vmatpush1.msra.mxu0 %v1671
    %1673 = vmatprep.subr.mxu0 0.0
    %v1674 = vand.u32 %v83, 4294901760
    %v1675 = vsub.f32 %v83, %v1674
    %v1676 = vand.u32 %v1675, 4294901760
    %1677 = vmatpush1.msra.mxu0 %v1676
    %1678 = vmatprep.subr.mxu0 0.0
    %v1679 = vand.u32 %v84, 4294901760
    %v1680 = vsub.f32 %v84, %v1679
    %v1681 = vand.u32 %v1680, 4294901760
    %1682 = vmatpush1.msra.mxu0 %v1681
    %1683 = vmatprep.subr.mxu0 0.0
    %v1684 = vand.u32 %v85, 4294901760
    %v1685 = vsub.f32 %v85, %v1684
    %v1686 = vand.u32 %v1685, 4294901760
    %1687 = vmatpush1.msra.mxu0 %v1686
    %1688 = vmatprep.subr.mxu0 0.0
    %v1689 = vand.u32 %v86, 4294901760
    %v1690 = vsub.f32 %v86, %v1689
    %v1691 = vand.u32 %v1690, 4294901760
    %1692 = vmatpush1.msra.mxu0 %v1691
    %1693 = vmatprep.subr.mxu0 0.0
    %v1694 = vand.u32 %v87, 4294901760
    %v1695 = vsub.f32 %v87, %v1694
    %v1696 = vand.u32 %v1695, 4294901760
    %1697 = vmatpush1.msra.mxu0 %v1696
    %1698 = vmatprep.subr.mxu0 0.0
    %v1699 = vand.u32 %v88, 4294901760
    %v1700 = vsub.f32 %v88, %v1699
    %v1701 = vand.u32 %v1700, 4294901760
    %1702 = vmatpush1.msra.mxu0 %v1701
    %1703 = vmatprep.subr.mxu0 0.0
    %v1704 = vand.u32 %v89, 4294901760
    %v1705 = vsub.f32 %v89, %v1704
    %v1706 = vand.u32 %v1705, 4294901760
    %1707 = vmatpush1.msra.mxu0 %v1706
    %1708 = vmatprep.subr.mxu0 0.0
    %v1709 = vand.u32 %v90, 4294901760
    %v1710 = vsub.f32 %v90, %v1709
    %v1711 = vand.u32 %v1710, 4294901760
    %1712 = vmatpush1.msra.mxu0 %v1711
    %1713 = vmatprep.subr.mxu0 0.0
    %v1714 = vand.u32 %v91, 4294901760
    %v1715 = vsub.f32 %v91, %v1714
    %v1716 = vand.u32 %v1715, 4294901760
    %1717 = vmatpush1.msra.mxu0 %v1716
    %1718 = vmatprep.subr.mxu0 0.0
    %v1719 = vand.u32 %v92, 4294901760
    %v1720 = vsub.f32 %v92, %v1719
    %v1721 = vand.u32 %v1720, 4294901760
    %1722 = vmatpush1.msra.mxu0 %v1721
    %1723 = vmatprep.subr.mxu0 0.0
    %v1724 = vand.u32 %v93, 4294901760
    %v1725 = vsub.f32 %v93, %v1724
    %v1726 = vand.u32 %v1725, 4294901760
    %1727 = vmatpush1.msra.mxu0 %v1726
    %v1728 = vand.u32 %v111, 4294901760
    %1729 = vmatprep.mubr.f32.mxu0 %v1728
    %v1730 = vand.u32 %v107, 4294901760
    %1731 = vmatmul.mubr.f32.gmra.mrb[0].mxu0 %v1730
    %v1732 = vpop.f32.mrb[0].mxu0
    %v1733 = vadd.f32 %v1565, %v1732
    %v1734 = vpop.f32.mrb[0].mxu0
    %1735 = vdwg.mxu0
    %1736 = vmatprep.subr.mxu0 0.0
    %v1737 = vand.u32 %v62, 4294901760
    %1738 = vmatpush1.msra.mxu0 %v1737
    %1739 = vmatprep.subr.mxu0 0.0
    %v1740 = vand.u32 %v63, 4294901760
    %1741 = vmatpush1.msra.mxu0 %v1740
    %1742 = vmatprep.subr.mxu0 0.0
    %v1743 = vand.u32 %v64, 4294901760
    %1744 = vmatpush1.msra.mxu0 %v1743
    %1745 = vmatprep.subr.mxu0 0.0
    %v1746 = vand.u32 %v65, 4294901760
    %1747 = vmatpush1.msra.mxu0 %v1746
    %1748 = vmatprep.subr.mxu0 0.0
    %v1749 = vand.u32 %v66, 4294901760
    %1750 = vmatpush1.msra.mxu0 %v1749
    %1751 = vmatprep.subr.mxu0 0.0
    %v1752 = vand.u32 %v67, 4294901760
    %1753 = vmatpush1.msra.mxu0 %v1752
    %1754 = vmatprep.subr.mxu0 0.0
    %v1755 = vand.u32 %v68, 4294901760
    %1756 = vmatpush1.msra.mxu0 %v1755
    %1757 = vmatprep.subr.mxu0 0.0
    %v1758 = vand.u32 %v69, 4294901760
    %1759 = vmatpush1.msra.mxu0 %v1758
    %1760 = vmatprep.subr.mxu0 0.0
    %v1761 = vand.u32 %v70, 4294901760
    %1762 = vmatpush1.msra.mxu0 %v1761
    %1763 = vmatprep.subr.mxu0 0.0
    %v1764 = vand.u32 %v71, 4294901760
    %1765 = vmatpush1.msra.mxu0 %v1764
    %1766 = vmatprep.subr.mxu0 0.0
    %v1767 = vand.u32 %v72, 4294901760
    %1768 = vmatpush1.msra.mxu0 %v1767
    %1769 = vmatprep.subr.mxu0 0.0
    %v1770 = vand.u32 %v73, 4294901760
    %1771 = vmatpush1.msra.mxu0 %v1770
    %1772 = vmatprep.subr.mxu0 0.0
    %v1773 = vand.u32 %v74, 4294901760
    %1774 = vmatpush1.msra.mxu0 %v1773
    %1775 = vmatprep.subr.mxu0 0.0
    %v1776 = vand.u32 %v75, 4294901760
    %1777 = vmatpush1.msra.mxu0 %v1776
    %1778 = vmatprep.subr.mxu0 0.0
    %v1779 = vand.u32 %v76, 4294901760
    %1780 = vmatpush1.msra.mxu0 %v1779
    %1781 = vmatprep.subr.mxu0 0.0
    %v1782 = vand.u32 %v77, 4294901760
    %1783 = vmatpush1.msra.mxu0 %v1782
    %1784 = vmatprep.subr.mxu0 0.0
    %v1785 = vand.u32 %v78, 4294901760
    %1786 = vmatpush1.msra.mxu0 %v1785
    %1787 = vmatprep.subr.mxu0 0.0
    %v1788 = vand.u32 %v79, 4294901760
    %1789 = vmatpush1.msra.mxu0 %v1788
    %1790 = vmatprep.subr.mxu0 0.0
    %v1791 = vand.u32 %v80, 4294901760
    %1792 = vmatpush1.msra.mxu0 %v1791
    %1793 = vmatprep.subr.mxu0 0.0
    %v1794 = vand.u32 %v81, 4294901760
    %1795 = vmatpush1.msra.mxu0 %v1794
    %1796 = vmatprep.subr.mxu0 0.0
    %v1797 = vand.u32 %v82, 4294901760
    %1798 = vmatpush1.msra.mxu0 %v1797
    %1799 = vmatprep.subr.mxu0 0.0
    %v1800 = vand.u32 %v83, 4294901760
    %1801 = vmatpush1.msra.mxu0 %v1800
    %1802 = vmatprep.subr.mxu0 0.0
    %v1803 = vand.u32 %v84, 4294901760
    %1804 = vmatpush1.msra.mxu0 %v1803
    %1805 = vmatprep.subr.mxu0 0.0
    %v1806 = vand.u32 %v85, 4294901760
    %1807 = vmatpush1.msra.mxu0 %v1806
    %1808 = vmatprep.subr.mxu0 0.0
    %v1809 = vand.u32 %v86, 4294901760
    %1810 = vmatpush1.msra.mxu0 %v1809
    %1811 = vmatprep.subr.mxu0 0.0
    %v1812 = vand.u32 %v87, 4294901760
    %1813 = vmatpush1.msra.mxu0 %v1812
    %1814 = vmatprep.subr.mxu0 0.0
    %v1815 = vand.u32 %v88, 4294901760
    %1816 = vmatpush1.msra.mxu0 %v1815
    %1817 = vmatprep.subr.mxu0 0.0
    %v1818 = vand.u32 %v89, 4294901760
    %1819 = vmatpush1.msra.mxu0 %v1818
    %1820 = vmatprep.subr.mxu0 0.0
    %v1821 = vand.u32 %v90, 4294901760
    %1822 = vmatpush1.msra.mxu0 %v1821
    %1823 = vmatprep.subr.mxu0 0.0
    %v1824 = vand.u32 %v91, 4294901760
    %1825 = vmatpush1.msra.mxu0 %v1824
    %1826 = vmatprep.subr.mxu0 0.0
    %v1827 = vand.u32 %v92, 4294901760
    %1828 = vmatpush1.msra.mxu0 %v1827
    %1829 = vmatprep.subr.mxu0 0.0
    %v1830 = vand.u32 %v93, 4294901760
    %1831 = vmatpush1.msra.mxu0 %v1830
    %v1832 = vand.u32 %v111, 4294901760
    %1833 = vmatprep.mubr.f32.mxu0 %v1832
    %v1834 = vand.u32 %v107, 4294901760
    %1835 = vmatmul.mubr.f32.gmra.mrb[0].mxu0 %v1834
    %v1836 = vpop.f32.mrb[0].mxu0
    %v1837 = vadd.f32 %v1733, %v1836
    %v1838 = vpop.f32.mrb[0].mxu0
    %1839 = vdwg.mxu0
    %1840 = vst [vmem:[%s3] sm:$0x1] %v1837
    // Predicated region
    $region18: #{lr_forward.1} parent=1 // pred_check
      _
    $region19: #{lr_forward.1} parent=1 // pred_check_branch
      %1842 = sbr.rel (0) target = $region21
    $region20: #{lr_forward.1} parent=1 // pred_region
      _
    $region21: #{lr_forward.1} parent=1 // pred_fallthru
      _
    // Predicated region
    $region22: #{lr_forward.1} parent=1 // pred_check
      _
    $region23: #{lr_forward.1} parent=1 // pred_check_branch
      %1844 = sbr.rel (0) target = $region25
    $region24: #{lr_forward.1} parent=1 // pred_region
      _
    $region25: #{lr_forward.1} parent=1 // pred_fallthru
      _
    %1845 = vsyncpa [#allocation3], 1

</llo_original>
